<compile_context>
chip_gen: v5e
topology: v5e:2x2
jax: 0.10.0
libtpu: 0.0.40
codegen_flags: <defaults>
</compile_context>

<pallas_src>
import jax
import jax.numpy as jnp
from jax.experimental import pallas as pl
from jax.experimental.pallas import tpu as pltpu


# ----------------------------- Pallas kernels ------------------------------ #

def conv_relu_pool_kernel(p_ref, w_ref, b_ref, o_ref):
    """Fused conv (pool-window matmul) + 2x2 max-pool + bias + ReLU.

    p_ref: (TM, 16*Cin)   one row per *pooled* output pixel: the 4x4 input
                          window (zero-padded) that feeds its 2x2 pool group
    w_ref: (16*Cin, 4*Cout)  combined weight; column block q holds the conv
                             weights of pooling sub-position q (zeros on the
                             7 window taps that sub-position does not use)
    b_ref: (1, Cout)
    o_ref: (TM, Cout)
    """
    y = jnp.dot(p_ref[...], w_ref[...], preferred_element_type=jnp.float32)
    c = o_ref.shape[1]
    m01 = jnp.maximum(y[:, 0 * c:1 * c], y[:, 1 * c:2 * c])
    m23 = jnp.maximum(y[:, 2 * c:3 * c], y[:, 3 * c:4 * c])
    # bias + ReLU once, after the pool max (equivalent to PyTorch's order).
    o_ref[...] = jnp.maximum(jnp.maximum(m01, m23) + b_ref[...], 0.0)


def fc_kernel(x_ref, w_ref, b_ref, o_ref):
    """Linear layer: (TM, K) @ (K, 128) + (1, 128)  (lane-dense output)."""
    o_ref[...] = jnp.dot(x_ref[...], w_ref[...],
                         preferred_element_type=jnp.float32) + b_ref[...]


# --------------------------- pallas_call wrappers --------------------------- #

_COMPILER_PARAMS = pltpu.CompilerParams(
    dimension_semantics=("parallel",),
    vmem_limit_bytes=32 * 1024 * 1024,
)


def conv_relu_pool(patches, w_comb, b_row, c_out, *, row_tile=1024):
    n, k = patches.shape
    tm = n if n <= row_tile else row_tile
    return pl.pallas_call(
        conv_relu_pool_kernel,
        out_shape=jax.ShapeDtypeStruct((n, c_out), jnp.float32),
        grid=(pl.cdiv(n, tm),),
        in_specs=[
            pl.BlockSpec((tm, k), lambda i: (i, 0)),
            pl.BlockSpec((k, 4 * c_out), lambda i: (0, 0)),
            pl.BlockSpec((1, c_out), lambda i: (0, 0)),
        ],
        out_specs=pl.BlockSpec((tm, c_out), lambda i: (i, 0)),
        compiler_params=_COMPILER_PARAMS,
    )(patches, w_comb, b_row)


def fc(x, w_pad, b_pad, *, row_tile=256):
    n, k = x.shape
    n_out = w_pad.shape[1]                    # 128 (padded, lane-dense)
    tm = n if n <= row_tile else row_tile
    return pl.pallas_call(
        fc_kernel,
        out_shape=jax.ShapeDtypeStruct((n, n_out), jnp.float32),
        grid=(pl.cdiv(n, tm),),
        in_specs=[
            pl.BlockSpec((tm, k), lambda i: (i, 0)),
            pl.BlockSpec((k, n_out), lambda i: (0, 0)),
            pl.BlockSpec((1, n_out), lambda i: (0, 0)),
        ],
        out_specs=pl.BlockSpec((tm, n_out), lambda i: (i, 0)),
        compiler_params=_COMPILER_PARAMS,
    )(x, w_pad, b_pad)


# ------------------------------- JAX glue ---------------------------------- #

def pool_window_patches(x_nhwc):
    """For every pooled output pixel, gather its zero-padded 4x4 input window.

    x_nhwc: (B, H, W, C)  ->  (B*Ho*Wo, 16*C)  with Ho = H//2, Wo = W//2.
    Row value at index (u*4+v)*C + ci is xpad[b, 2*py+u, 2*px+v, ci].
    """
    B, H, W, C = x_nhwc.shape
    Ho, Wo = H // 2, W // 2
    xp = jnp.pad(x_nhwc, ((0, 0), (1, 1), (1, 1), (0, 0)))
    cols = []
    for u in range(4):
        for v in range(4):
            cols.append(xp[:, u:u + 2 * Ho:2, v:v + 2 * Wo:2, :])   # (B,Ho,Wo,C)
    p = jnp.concatenate(cols, axis=-1)                               # (B,Ho,Wo,16C)
    return p.reshape(B * Ho * Wo, 16 * C)


def combine_conv_pool_weight(w_oihw):
    """OIHW (Cout,Cin,3,3) -> (16*Cin, 4*Cout) pool-window conv matrix."""
    w_t = jnp.transpose(w_oihw, (2, 3, 1, 0))            # (3,3,Cin,Cout)
    cin, cout = w_t.shape[2], w_t.shape[3]
    quads = []
    for r, s in ((0, 0), (0, 1), (1, 0), (1, 1)):        # 2x2 pool sub-positions
        q = jnp.pad(w_t, ((r, 1 - r), (s, 1 - s), (0, 0), (0, 0)))   # (4,4,Cin,Cout)
        quads.append(q.reshape(16 * cin, cout))
    return jnp.concatenate(quads, axis=1)                # (16*Cin, 4*Cout)


def prepare_params(params):
    """One-time weight prep (hoisted out of the forward pass)."""
    w1c = combine_conv_pool_weight(params["w1"])         # (16, 128)
    w2c = combine_conv_pool_weight(params["w2"])         # (512, 256)
    # FC weight: PyTorch flattens NCHW (c, py, px); our features are (py, px, c).
    wf = params["wf"].reshape(10, 64, 7, 7)
    wf = jnp.transpose(wf, (0, 2, 3, 1)).reshape(10, 7 * 7 * 64).T   # (3136, 10)
    wfp = jnp.zeros((7 * 7 * 64, 128), jnp.float32).at[:, :10].set(wf)
    bfp = jnp.zeros((1, 128), jnp.float32).at[:, :10].set(params["bf"][None, :])
    return {
        "w1c": w1c, "b1r": params["b1"].reshape(1, 32),
        "w2c": w2c, "b2r": params["b2"].reshape(1, 64),
        "wfp": wfp, "bfp": bfp,
    }


def digit_classifier_forward(x_nchw, prep):
    B = x_nchw.shape[0]
    x = jnp.transpose(x_nchw, (0, 2, 3, 1))              # NCHW -> NHWC (B,28,28,1)

    # conv1 (1->32, 3x3, pad 1) + ReLU + maxpool 2x2     -> (B*196, 32)
    p1 = pool_window_patches(x)                          # (B*196, 16)
    y1 = conv_relu_pool(p1, prep["w1c"], prep["b1r"], 32)
    y1 = y1.reshape(B, 14, 14, 32)

    # conv2 (32->64, 3x3, pad 1) + ReLU + maxpool 2x2    -> (B*49, 64)
    p2 = pool_window_patches(y1)                         # (B*49, 512)
    y2 = conv_relu_pool(p2, prep["w2c"], prep["b2r"], 64)

    # flatten (already NHWC row order, matches permuted fc weight) + fc
    feat = y2.reshape(B, 7 * 7 * 64)
    logits = fc(feat, prep["wfp"], prep["bfp"])          # (B, 128) lane-dense
    return logits[:, :10]


# --------------------------- params & reference ---------------------------- #

def init_params(key):
    k = jax.random.split(key, 6)
    s = 0.05
    return {
        "w1": jax.random.normal(k[0], (32, 1, 3, 3), jnp.float32) * s,   # OIHW
        "b1": jax.random.normal(k[1], (32,), jnp.float32) * s,
        "w2": jax.random.normal(k[2], (64, 32, 3, 3), jnp.float32) * s,  # OIHW
        "b2": jax.random.normal(k[3], (64,), jnp.float32) * s,
        "wf": jax.random.normal(k[4], (10, 7 * 7 * 64), jnp.float32) * s,
        "bf": jax.random.normal(k[5], (10,), jnp.float32) * s,
    }


def reference_forward(x, p):
    """Pure-JAX (XLA) reference matching the PyTorch forward exactly."""
    dn = ("NCHW", "OIHW", "NCHW")
    y = jax.lax.conv_general_dilated(x, p["w1"], (1, 1), ((1, 1), (1, 1)),
                                     dimension_numbers=dn)
    y = jnp.maximum(y + p["b1"].reshape(1, 32, 1, 1), 0.0)
    y = jax.lax.reduce_window(y, -jnp.inf, jax.lax.max,
                              (1, 1, 2, 2), (1, 1, 2, 2), "VALID")
    y = jax.lax.conv_general_dilated(y, p["w2"], (1, 1), ((1, 1), (1, 1)),
                                     dimension_numbers=dn)
    y = jnp.maximum(y + p["b2"].reshape(1, 64, 1, 1), 0.0)
    y = jax.lax.reduce_window(y, -jnp.inf, jax.lax.max,
                              (1, 1, 2, 2), (1, 1, 2, 2), "VALID")
    y = y.reshape(y.shape[0], -1)
    return y @ p["wf"].T + p["bf"]


if __name__ == "__main__":
    key = jax.random.PRNGKey(0)
    pkey, xkey = jax.random.split(key)
    params = init_params(pkey)
    prep = prepare_params(params)        # one-time weight prep (not per-forward)

    # MNIST-sized input (the fc layer's 7*7*64 implies 28x28 spatial), batch=2.
    x = jax.random.normal(xkey, (2, 1, 28, 28), jnp.float32)

    out = jax.jit(digit_classifier_forward)(x, prep)
    out = jax.block_until_ready(out)

    ref = reference_forward(x, params)
    assert out.shape == (2, 10)
    err = float(jnp.max(jnp.abs(out - ref)))
    assert jnp.allclose(out, ref, atol=1e-4, rtol=1e-4), f"max abs err {err}"
    print("KERNEL_OK")
</pallas_src>

<mosaic_0001>
module attributes {stable_mosaic.version = 11 : i64} {
  func.func @conv_relu_pool_kernel(%arg0: i32, %arg1: memref<392x16xf32, #tpu.memory_space<vmem>>, %arg2: memref<16x128xf32, #tpu.memory_space<vmem>>, %arg3: memref<1x32xf32, #tpu.memory_space<vmem>>, %arg4: memref<392x32xf32, #tpu.memory_space<vmem>>) attributes {dimension_semantics = [#tpu.dimension_semantics<parallel>], iteration_bounds = array<i64: 1>, scalar_prefetch = 0 : i64, scratch_operands = 0 : i64, tpu.core_type = #tpu.core_type<tc>, window_params = [{transform_indices = @transform_0, window_bounds = array<i64: 392, 16>}, {pipeline_mode = #tpu.pipeline_mode<synchronous>, transform_indices = @transform_1, window_bounds = array<i64: 16, 128>}, {pipeline_mode = #tpu.pipeline_mode<synchronous>, transform_indices = @transform_2, window_bounds = array<i64: 1, 32>}, {transform_indices = @transform_3, window_bounds = array<i64: 392, 32>}]} {
    %c0 = arith.constant 0 : index
    %c0_0 = arith.constant 0 : index
    %0 = vector.load %arg1[%c0, %c0_0] : memref<392x16xf32, #tpu.memory_space<vmem>>, vector<392x16xf32>
    %c0_1 = arith.constant 0 : index
    %c0_2 = arith.constant 0 : index
    %1 = vector.load %arg2[%c0_1, %c0_2] : memref<16x128xf32, #tpu.memory_space<vmem>>, vector<16x128xf32>
    %cst = arith.constant dense<0.000000e+00> : vector<392x128xf32>
    %2 = tpu.matmul %0, %1, %cst {dimension_numbers = #tpu.dot_dimension_numbers<[1], [0], [0], [1], [0, 0, 1, 1], [], []>} : vector<392x16xf32>, vector<16x128xf32>, vector<392x128xf32> -> vector<392x128xf32>
    %3 = vector.extract_strided_slice %2 {offsets = [0, 0], sizes = [392, 32], strides = [1, 1]} : vector<392x128xf32> to vector<392x32xf32>
    %4 = vector.extract_strided_slice %2 {offsets = [0, 32], sizes = [392, 32], strides = [1, 1]} : vector<392x128xf32> to vector<392x32xf32>
    %5 = arith.maximumf %3, %4 : vector<392x32xf32>
    %6 = vector.extract_strided_slice %2 {offsets = [0, 64], sizes = [392, 32], strides = [1, 1]} : vector<392x128xf32> to vector<392x32xf32>
    %7 = vector.extract_strided_slice %2 {offsets = [0, 96], sizes = [392, 32], strides = [1, 1]} : vector<392x128xf32> to vector<392x32xf32>
    %8 = arith.maximumf %6, %7 : vector<392x32xf32>
    %9 = arith.maximumf %5, %8 : vector<392x32xf32>
    %c0_3 = arith.constant 0 : index
    %c0_4 = arith.constant 0 : index
    %10 = vector.load %arg3[%c0_3, %c0_4] : memref<1x32xf32, #tpu.memory_space<vmem>>, vector<1x32xf32>
    %11 = vector.broadcast %10 : vector<1x32xf32> to vector<392x32xf32>
    %12 = arith.addf %9, %11 : vector<392x32xf32>
    %cst_5 = arith.constant 0.000000e+00 : f32
    %13 = vector.broadcast %cst_5 : f32 to vector<392x32xf32>
    %14 = arith.maximumf %12, %13 : vector<392x32xf32>
    %c0_6 = arith.constant 0 : index
    %c0_7 = arith.constant 0 : index
    %15 = vector.load %arg4[%c0_6, %c0_7] : memref<392x32xf32, #tpu.memory_space<vmem>>, vector<392x32xf32>
    tpu.vector_store %arg4[%c0_6, %c0_7], %14 {strides = array<i32>} : memref<392x32xf32, #tpu.memory_space<vmem>>, vector<392x32xf32>,
    return
  }
  func.func @transform_0(%arg0: i32) -> (i32, i32) {
    %c0_i32 = arith.constant 0 : i32
    %c0_i32_0 = arith.constant 0 : i32
    return %arg0, %c0_i32 : i32, i32
  }
  func.func @transform_1(%arg0: i32) -> (i32, i32) {
    %c0_i32 = arith.constant 0 : i32
    %c0_i32_0 = arith.constant 0 : i32
    %c0_i32_1 = arith.constant 0 : i32
    return %c0_i32, %c0_i32_0 : i32, i32
  }
  func.func @transform_2(%arg0: i32) -> (i32, i32) {
    %c0_i32 = arith.constant 0 : i32
    %c0_i32_0 = arith.constant 0 : i32
    %c0_i32_1 = arith.constant 0 : i32
    return %c0_i32, %c0_i32_0 : i32, i32
  }
  func.func @transform_3(%arg0: i32) -> (i32, i32) {
    %c0_i32 = arith.constant 0 : i32
    %c0_i32_0 = arith.constant 0 : i32
    return %arg0, %c0_i32 : i32, i32
  }
}

module attributes {stable_mosaic.version = 11 : i64} {
  func.func @conv_relu_pool_kernel(%arg0: i32, %arg1: memref<98x512xf32, #tpu.memory_space<vmem>>, %arg2: memref<512x256xf32, #tpu.memory_space<vmem>>, %arg3: memref<1x64xf32, #tpu.memory_space<vmem>>, %arg4: memref<98x64xf32, #tpu.memory_space<vmem>>) attributes {dimension_semantics = [#tpu.dimension_semantics<parallel>], iteration_bounds = array<i64: 1>, scalar_prefetch = 0 : i64, scratch_operands = 0 : i64, tpu.core_type = #tpu.core_type<tc>, window_params = [{transform_indices = @transform_0, window_bounds = array<i64: 98, 512>}, {pipeline_mode = #tpu.pipeline_mode<synchronous>, transform_indices = @transform_1, window_bounds = array<i64: 512, 256>}, {pipeline_mode = #tpu.pipeline_mode<synchronous>, transform_indices = @transform_2, window_bounds = array<i64: 1, 64>}, {transform_indices = @transform_3, window_bounds = array<i64: 98, 64>}]} {
    %c0 = arith.constant 0 : index
    %c0_0 = arith.constant 0 : index
    %0 = vector.load %arg1[%c0, %c0_0] : memref<98x512xf32, #tpu.memory_space<vmem>>, vector<98x512xf32>
    %c0_1 = arith.constant 0 : index
    %c0_2 = arith.constant 0 : index
    %1 = vector.load %arg2[%c0_1, %c0_2] : memref<512x256xf32, #tpu.memory_space<vmem>>, vector<512x256xf32>
    %cst = arith.constant dense<0.000000e+00> : vector<98x256xf32>
    %2 = tpu.matmul %0, %1, %cst {dimension_numbers = #tpu.dot_dimension_numbers<[1], [0], [0], [1], [0, 0, 1, 1], [], []>} : vector<98x512xf32>, vector<512x256xf32>, vector<98x256xf32> -> vector<98x256xf32>
    %3 = vector.extract_strided_slice %2 {offsets = [0, 0], sizes = [98, 64], strides = [1, 1]} : vector<98x256xf32> to vector<98x64xf32>
    %4 = vector.extract_strided_slice %2 {offsets = [0, 64], sizes = [98, 64], strides = [1, 1]} : vector<98x256xf32> to vector<98x64xf32>
    %5 = arith.maximumf %3, %4 : vector<98x64xf32>
    %6 = vector.extract_strided_slice %2 {offsets = [0, 128], sizes = [98, 64], strides = [1, 1]} : vector<98x256xf32> to vector<98x64xf32>
    %7 = vector.extract_strided_slice %2 {offsets = [0, 192], sizes = [98, 64], strides = [1, 1]} : vector<98x256xf32> to vector<98x64xf32>
    %8 = arith.maximumf %6, %7 : vector<98x64xf32>
    %9 = arith.maximumf %5, %8 : vector<98x64xf32>
    %c0_3 = arith.constant 0 : index
    %c0_4 = arith.constant 0 : index
    %10 = vector.load %arg3[%c0_3, %c0_4] : memref<1x64xf32, #tpu.memory_space<vmem>>, vector<1x64xf32>
    %11 = vector.broadcast %10 : vector<1x64xf32> to vector<98x64xf32>
    %12 = arith.addf %9, %11 : vector<98x64xf32>
    %cst_5 = arith.constant 0.000000e+00 : f32
    %13 = vector.broadcast %cst_5 : f32 to vector<98x64xf32>
    %14 = arith.maximumf %12, %13 : vector<98x64xf32>
    %c0_6 = arith.constant 0 : index
    %c0_7 = arith.constant 0 : index
    %15 = vector.load %arg4[%c0_6, %c0_7] : memref<98x64xf32, #tpu.memory_space<vmem>>, vector<98x64xf32>
    tpu.vector_store %arg4[%c0_6, %c0_7], %14 {strides = array<i32>} : memref<98x64xf32, #tpu.memory_space<vmem>>, vector<98x64xf32>,
    return
  }
  func.func @transform_0(%arg0: i32) -> (i32, i32) {
    %c0_i32 = arith.constant 0 : i32
    %c0_i32_0 = arith.constant 0 : i32
    return %arg0, %c0_i32 : i32, i32
  }
  func.func @transform_1(%arg0: i32) -> (i32, i32) {
    %c0_i32 = arith.constant 0 : i32
    %c0_i32_0 = arith.constant 0 : i32
    %c0_i32_1 = arith.constant 0 : i32
    return %c0_i32, %c0_i32_0 : i32, i32
  }
  func.func @transform_2(%arg0: i32) -> (i32, i32) {
    %c0_i32 = arith.constant 0 : i32
    %c0_i32_0 = arith.constant 0 : i32
    %c0_i32_1 = arith.constant 0 : i32
    return %c0_i32, %c0_i32_0 : i32, i32
  }
  func.func @transform_3(%arg0: i32) -> (i32, i32) {
    %c0_i32 = arith.constant 0 : i32
    %c0_i32_0 = arith.constant 0 : i32
    return %arg0, %c0_i32 : i32, i32
  }
}

module attributes {stable_mosaic.version = 11 : i64} {
  func.func @fc_kernel(%arg0: i32, %arg1: memref<2x3136xf32, #tpu.memory_space<vmem>>, %arg2: memref<3136x128xf32, #tpu.memory_space<vmem>>, %arg3: memref<1x128xf32, #tpu.memory_space<vmem>>, %arg4: memref<2x128xf32, #tpu.memory_space<vmem>>) attributes {dimension_semantics = [#tpu.dimension_semantics<parallel>], iteration_bounds = array<i64: 1>, scalar_prefetch = 0 : i64, scratch_operands = 0 : i64, tpu.core_type = #tpu.core_type<tc>, window_params = [{transform_indices = @transform_0, window_bounds = array<i64: 2, 3136>}, {pipeline_mode = #tpu.pipeline_mode<synchronous>, transform_indices = @transform_1, window_bounds = array<i64: 3136, 128>}, {pipeline_mode = #tpu.pipeline_mode<synchronous>, transform_indices = @transform_2, window_bounds = array<i64: 1, 128>}, {transform_indices = @transform_3, window_bounds = array<i64: 2, 128>}]} {
    %c0 = arith.constant 0 : index
    %c0_0 = arith.constant 0 : index
    %0 = vector.load %arg1[%c0, %c0_0] : memref<2x3136xf32, #tpu.memory_space<vmem>>, vector<2x3136xf32>
    %c0_1 = arith.constant 0 : index
    %c0_2 = arith.constant 0 : index
    %1 = vector.load %arg2[%c0_1, %c0_2] : memref<3136x128xf32, #tpu.memory_space<vmem>>, vector<3136x128xf32>
    %cst = arith.constant dense<0.000000e+00> : vector<2x128xf32>
    %2 = tpu.matmul %0, %1, %cst {dimension_numbers = #tpu.dot_dimension_numbers<[1], [0], [0], [1], [0, 0, 1, 1], [], []>} : vector<2x3136xf32>, vector<3136x128xf32>, vector<2x128xf32> -> vector<2x128xf32>
    %c0_3 = arith.constant 0 : index
    %c0_4 = arith.constant 0 : index
    %3 = vector.load %arg3[%c0_3, %c0_4] : memref<1x128xf32, #tpu.memory_space<vmem>>, vector<1x128xf32>
    %4 = vector.broadcast %3 : vector<1x128xf32> to vector<2x128xf32>
    %5 = arith.addf %2, %4 : vector<2x128xf32>
    %c0_5 = arith.constant 0 : index
    %c0_6 = arith.constant 0 : index
    %6 = vector.load %arg4[%c0_5, %c0_6] : memref<2x128xf32, #tpu.memory_space<vmem>>, vector<2x128xf32>
    tpu.vector_store %arg4[%c0_5, %c0_6], %5 {strides = array<i32>} : memref<2x128xf32, #tpu.memory_space<vmem>>, vector<2x128xf32>,
    return
  }
  func.func @transform_0(%arg0: i32) -> (i32, i32) {
    %c0_i32 = arith.constant 0 : i32
    %c0_i32_0 = arith.constant 0 : i32
    return %arg0, %c0_i32 : i32, i32
  }
  func.func @transform_1(%arg0: i32) -> (i32, i32) {
    %c0_i32 = arith.constant 0 : i32
    %c0_i32_0 = arith.constant 0 : i32
    %c0_i32_1 = arith.constant 0 : i32
    return %c0_i32, %c0_i32_0 : i32, i32
  }
  func.func @transform_2(%arg0: i32) -> (i32, i32) {
    %c0_i32 = arith.constant 0 : i32
    %c0_i32_0 = arith.constant 0 : i32
    %c0_i32_1 = arith.constant 0 : i32
    return %c0_i32, %c0_i32_0 : i32, i32
  }
  func.func @transform_3(%arg0: i32) -> (i32, i32) {
    %c0_i32 = arith.constant 0 : i32
    %c0_i32_0 = arith.constant 0 : i32
    return %arg0, %c0_i32 : i32, i32
  }
}

</mosaic_0001>

<llo_original>
// kernel: digit_classifier_forward.3
$region0: #{digit_classifier_forward.3}
  #allocation0 [shape = 'u32[]', space=smem, size = 0x4, offset = 0x4, fixed_abs, tag = 'smem constant byte address 0x4 - core index']
  #allocation1 [shape = 'u32[72,128]{1,0:T(1,128)}', space=vmem, size = 0x9000, scoped, tag = 'internal scratch']
  %s0 = inlined_call_operand.vmem [shape: f32[392,16], index: 0, kind: input, shape index: {}]
  %s1 = inlined_call_operand.vmem [shape: f32[16,128], index: 1, kind: input, shape index: {}]
  %s2 = inlined_call_operand.vmem [shape: f32[1,32], index: 2, kind: input, shape index: {}]
  %s3 = inlined_call_operand.vmem [shape: f32[392,32], index: 3, kind: output, shape index: {}]
  %s4 = sld [smem:[#allocation0]]
  $region22: #{digit_classifier_forward.3} parent=0
    _
  %s6 = ssub.s32 1, %s4
  %s7 = scalar_select 0, %s6, %s4
  // Predicated region
  $region2: #{digit_classifier_forward.3} parent=0 // pred_check
    _
  $region3: #{digit_classifier_forward.3} parent=0 // pred_check_branch
    %9 = sbr.rel (0) target = $region5
  $region4: #{digit_classifier_forward.3} parent=0 // pred_region
    _
  $region5: #{digit_classifier_forward.3} parent=0 // pred_fallthru
    _
  // Predicated region
  $region6: #{digit_classifier_forward.3} parent=0 // pred_check
    _
  $region7: #{digit_classifier_forward.3} parent=0 // pred_check_branch
    %11 = sbr.rel (0) target = $region9
  $region8: #{digit_classifier_forward.3} parent=0 // pred_region
    _
  $region9: #{digit_classifier_forward.3} parent=0 // pred_fallthru
    _
  // Predicated region
  $region10: #{digit_classifier_forward.3} parent=0 // pred_check
    _
  $region11: #{digit_classifier_forward.3} parent=0 // pred_check_branch
    %13 = sbr.rel (0) target = $region13
  $region12: #{digit_classifier_forward.3} parent=0 // pred_region
    _
  $region13: #{digit_classifier_forward.3} parent=0 // pred_fallthru
    _
  %v14 = vld [vmem:[%s0] sm:$0xff]
  %v15 = vld [vmem:[%s0 + $0x8] sm:$0xff]
  %v16 = vld [vmem:[%s0 + $0x10] sm:$0xff]
  %v17 = vld [vmem:[%s0 + $0x18] sm:$0xff]
  %v18 = vld [vmem:[%s0 + $0x20] sm:$0xff]
  %v19 = vld [vmem:[%s0 + $0x28] sm:$0xff]
  %v20 = vld [vmem:[%s0 + $0x30] sm:$0xff]
  %v21 = vld [vmem:[%s0 + $0x38] sm:$0xff]
  %v22 = vld [vmem:[%s0 + $0x40] sm:$0xff]
  %v23 = vld [vmem:[%s0 + $0x48] sm:$0xff]
  %v24 = vld [vmem:[%s0 + $0x50] sm:$0xff]
  %v25 = vld [vmem:[%s0 + $0x58] sm:$0xff]
  %v26 = vld [vmem:[%s0 + $0x60] sm:$0xff]
  %v27 = vld [vmem:[%s0 + $0x68] sm:$0xff]
  %v28 = vld [vmem:[%s0 + $0x70] sm:$0xff]
  %v29 = vld [vmem:[%s0 + $0x78] sm:$0xff]
  %v30 = vld [vmem:[%s0 + $0x80] sm:$0xff]
  %v31 = vld [vmem:[%s0 + $0x88] sm:$0xff]
  %v32 = vld [vmem:[%s0 + $0x90] sm:$0xff]
  %v33 = vld [vmem:[%s0 + $0x98] sm:$0xff]
  %v34 = vld [vmem:[%s0 + $0xa0] sm:$0xff]
  %v35 = vld [vmem:[%s0 + $0xa8] sm:$0xff]
  %v36 = vld [vmem:[%s0 + $0xb0] sm:$0xff]
  %v37 = vld [vmem:[%s0 + $0xb8] sm:$0xff]
  %v38 = vld [vmem:[%s0 + $0xc0] sm:$0xff]
  %v39 = vld [vmem:[%s0 + $0xc8] sm:$0xff]
  %v40 = vld [vmem:[%s0 + $0xd0] sm:$0xff]
  %v41 = vld [vmem:[%s0 + $0xd8] sm:$0xff]
  %v42 = vld [vmem:[%s0 + $0xe0] sm:$0xff]
  %v43 = vld [vmem:[%s0 + $0xe8] sm:$0xff]
  %v44 = vld [vmem:[%s0 + $0xf0] sm:$0xff]
  %v45 = vld [vmem:[%s0 + $0xf8] sm:$0xff]
  %v46 = vld [vmem:[%s0 + $0x100] sm:$0xff]
  %v47 = vld [vmem:[%s0 + $0x108] sm:$0xff]
  %v48 = vld [vmem:[%s0 + $0x110] sm:$0xff]
  %v49 = vld [vmem:[%s0 + $0x118] sm:$0xff]
  %v50 = vld [vmem:[%s0 + $0x120] sm:$0xff]
  %v51 = vld [vmem:[%s0 + $0x128] sm:$0xff]
  %v52 = vld [vmem:[%s0 + $0x130] sm:$0xff]
  %v53 = vld [vmem:[%s0 + $0x138] sm:$0xff]
  %v54 = vld [vmem:[%s0 + $0x140] sm:$0xff]
  %v55 = vld [vmem:[%s0 + $0x148] sm:$0xff]
  %v56 = vld [vmem:[%s0 + $0x150] sm:$0xff]
  %v57 = vld [vmem:[%s0 + $0x158] sm:$0xff]
  %v58 = vld [vmem:[%s0 + $0x160] sm:$0xff]
  %v59 = vld [vmem:[%s0 + $0x168] sm:$0xff]
  %v60 = vld [vmem:[%s0 + $0x170] sm:$0xff]
  %v61 = vld [vmem:[%s0 + $0x178] sm:$0xff]
  %v62 = vld [vmem:[%s0 + $0x180] sm:$0xff]
  %v63 = vld [vmem:[%s1] sm:$0xff]
  %v64 = vld [vmem:[%s1 + $0x8] sm:$0xff]
  %vm65 = vcmask 130048
  %v67 = vsel %vm65, %v14, 0
  %v70 = vsel %vm65, %v15, 0
  %v73 = vsel %vm65, %v16, 0
  %v76 = vsel %vm65, %v17, 0
  %v79 = vsel %vm65, %v18, 0
  %v82 = vsel %vm65, %v19, 0
  %v85 = vsel %vm65, %v20, 0
  %v88 = vsel %vm65, %v21, 0
  %v91 = vsel %vm65, %v22, 0
  %v94 = vsel %vm65, %v23, 0
  %v97 = vsel %vm65, %v24, 0
  %v100 = vsel %vm65, %v25, 0
  %v103 = vsel %vm65, %v26, 0
  %v106 = vsel %vm65, %v27, 0
  %v109 = vsel %vm65, %v28, 0
  %v112 = vsel %vm65, %v29, 0
  %v115 = vsel %vm65, %v30, 0
  %v118 = vsel %vm65, %v31, 0
  %v121 = vsel %vm65, %v32, 0
  %v124 = vsel %vm65, %v33, 0
  %v127 = vsel %vm65, %v34, 0
  %v130 = vsel %vm65, %v35, 0
  %v133 = vsel %vm65, %v36, 0
  %v136 = vsel %vm65, %v37, 0
  %v139 = vsel %vm65, %v38, 0
  %v142 = vsel %vm65, %v39, 0
  %v145 = vsel %vm65, %v40, 0
  %v148 = vsel %vm65, %v41, 0
  %v151 = vsel %vm65, %v42, 0
  %v154 = vsel %vm65, %v43, 0
  %v157 = vsel %vm65, %v44, 0
  %v160 = vsel %vm65, %v45, 0
  %v163 = vsel %vm65, %v46, 0
  %v166 = vsel %vm65, %v47, 0
  %v169 = vsel %vm65, %v48, 0
  %v172 = vsel %vm65, %v49, 0
  %v175 = vsel %vm65, %v50, 0
  %v178 = vsel %vm65, %v51, 0
  %v181 = vsel %vm65, %v52, 0
  %v184 = vsel %vm65, %v53, 0
  %v187 = vsel %vm65, %v54, 0
  %v190 = vsel %vm65, %v55, 0
  %v193 = vsel %vm65, %v56, 0
  %v196 = vsel %vm65, %v57, 0
  %v199 = vsel %vm65, %v58, 0
  %v202 = vsel %vm65, %v59, 0
  %v205 = vsel %vm65, %v60, 0
  %v208 = vsel %vm65, %v61, 0
  %v211 = vsel %vm65, %v62, 0
  %213 = vmatpush.msra.mxu0 0.0
  %214 = vmatpush.msra.mxu0 0.0
  %215 = vmatpush.msra.mxu0 0.0
  %216 = vmatpush.msra.mxu0 0.0
  %217 = vmatpush.msra.mxu0 0.0
  %218 = vmatpush.msra.mxu0 0.0
  %219 = vmatpush.msra.mxu0 0.0
  %220 = vmatpush.msra.mxu0 0.0
  %221 = vmatpush.msra.mxu0 0.0
  %222 = vmatpush.msra.mxu0 0.0
  %223 = vmatpush.msra.mxu0 0.0
  %224 = vmatpush.msra.mxu0 0.0
  %225 = vmatpush.msra.mxu0 0.0
  %226 = vmatpush.msra.mxu0 0.0
  %227 = vmatpush.msra.mxu0 %v64
  %228 = vmatpush.msra.mxu0 %v63
  %229 = vmatmul.f32.gmra.mxu0 %v67
  %v230 = vpop.f32.mrf.mxu0
  %v231 = vadd.f32 0.0, %v230
  %232 = vmatmul.f32.gmra.mxu0 %v70
  %v233 = vpop.f32.mrf.mxu0
  %v234 = vadd.f32 0.0, %v233
  %235 = vmatmul.f32.gmra.mxu0 %v73
  %v236 = vpop.f32.mrf.mxu0
  %v237 = vadd.f32 0.0, %v236
  %238 = vmatmul.f32.gmra.mxu0 %v76
  %v239 = vpop.f32.mrf.mxu0
  %v240 = vadd.f32 0.0, %v239
  %241 = vmatmul.f32.gmra.mxu0 %v79
  %v242 = vpop.f32.mrf.mxu0
  %v243 = vadd.f32 0.0, %v242
  %244 = vmatmul.f32.gmra.mxu0 %v82
  %v245 = vpop.f32.mrf.mxu0
  %v246 = vadd.f32 0.0, %v245
  %247 = vmatmul.f32.gmra.mxu0 %v85
  %v248 = vpop.f32.mrf.mxu0
  %v249 = vadd.f32 0.0, %v248
  %250 = vmatmul.f32.gmra.mxu0 %v88
  %v251 = vpop.f32.mrf.mxu0
  %v252 = vadd.f32 0.0, %v251
  %253 = vmatmul.f32.gmra.mxu0 %v91
  %v254 = vpop.f32.mrf.mxu0
  %v255 = vadd.f32 0.0, %v254
  %256 = vmatmul.f32.gmra.mxu0 %v94
  %v257 = vpop.f32.mrf.mxu0
  %v258 = vadd.f32 0.0, %v257
  %259 = vmatmul.f32.gmra.mxu0 %v97
  %v260 = vpop.f32.mrf.mxu0
  %v261 = vadd.f32 0.0, %v260
  %262 = vmatmul.f32.gmra.mxu0 %v100
  %v263 = vpop.f32.mrf.mxu0
  %v264 = vadd.f32 0.0, %v263
  %265 = vmatmul.f32.gmra.mxu0 %v103
  %v266 = vpop.f32.mrf.mxu0
  %v267 = vadd.f32 0.0, %v266
  %268 = vmatmul.f32.gmra.mxu0 %v106
  %v269 = vpop.f32.mrf.mxu0
  %v270 = vadd.f32 0.0, %v269
  %271 = vmatmul.f32.gmra.mxu0 %v109
  %v272 = vpop.f32.mrf.mxu0
  %v273 = vadd.f32 0.0, %v272
  %274 = vmatmul.f32.gmra.mxu0 %v112
  %v275 = vpop.f32.mrf.mxu0
  %v276 = vadd.f32 0.0, %v275
  %277 = vmatmul.f32.gmra.mxu0 %v115
  %v278 = vpop.f32.mrf.mxu0
  %v279 = vadd.f32 0.0, %v278
  %280 = vmatmul.f32.gmra.mxu0 %v118
  %v281 = vpop.f32.mrf.mxu0
  %v282 = vadd.f32 0.0, %v281
  %283 = vmatmul.f32.gmra.mxu0 %v121
  %v284 = vpop.f32.mrf.mxu0
  %v285 = vadd.f32 0.0, %v284
  %286 = vmatmul.f32.gmra.mxu0 %v124
  %v287 = vpop.f32.mrf.mxu0
  %v288 = vadd.f32 0.0, %v287
  %289 = vmatmul.f32.gmra.mxu0 %v127
  %v290 = vpop.f32.mrf.mxu0
  %v291 = vadd.f32 0.0, %v290
  %292 = vmatmul.f32.gmra.mxu0 %v130
  %v293 = vpop.f32.mrf.mxu0
  %v294 = vadd.f32 0.0, %v293
  %295 = vmatmul.f32.gmra.mxu0 %v133
  %v296 = vpop.f32.mrf.mxu0
  %v297 = vadd.f32 0.0, %v296
  %298 = vmatmul.f32.gmra.mxu0 %v136
  %v299 = vpop.f32.mrf.mxu0
  %v300 = vadd.f32 0.0, %v299
  %301 = vmatmul.f32.gmra.mxu0 %v139
  %v302 = vpop.f32.mrf.mxu0
  %v303 = vadd.f32 0.0, %v302
  %304 = vmatmul.f32.gmra.mxu0 %v142
  %v305 = vpop.f32.mrf.mxu0
  %v306 = vadd.f32 0.0, %v305
  %307 = vmatmul.f32.gmra.mxu0 %v145
  %v308 = vpop.f32.mrf.mxu0
  %v309 = vadd.f32 0.0, %v308
  %310 = vmatmul.f32.gmra.mxu0 %v148
  %v311 = vpop.f32.mrf.mxu0
  %v312 = vadd.f32 0.0, %v311
  %313 = vmatmul.f32.gmra.mxu0 %v151
  %v314 = vpop.f32.mrf.mxu0
  %v315 = vadd.f32 0.0, %v314
  %316 = vmatmul.f32.gmra.mxu0 %v154
  %v317 = vpop.f32.mrf.mxu0
  %v318 = vadd.f32 0.0, %v317
  %319 = vmatmul.f32.gmra.mxu0 %v157
  %v320 = vpop.f32.mrf.mxu0
  %v321 = vadd.f32 0.0, %v320
  %322 = vmatmul.f32.gmra.mxu0 %v160
  %v323 = vpop.f32.mrf.mxu0
  %v324 = vadd.f32 0.0, %v323
  %325 = vmatmul.f32.gmra.mxu0 %v163
  %v326 = vpop.f32.mrf.mxu0
  %v327 = vadd.f32 0.0, %v326
  %328 = vmatmul.f32.gmra.mxu0 %v166
  %v329 = vpop.f32.mrf.mxu0
  %v330 = vadd.f32 0.0, %v329
  %331 = vmatmul.f32.gmra.mxu0 %v169
  %v332 = vpop.f32.mrf.mxu0
  %v333 = vadd.f32 0.0, %v332
  %334 = vmatmul.f32.gmra.mxu0 %v172
  %v335 = vpop.f32.mrf.mxu0
  %v336 = vadd.f32 0.0, %v335
  %337 = vmatmul.f32.gmra.mxu0 %v175
  %v338 = vpop.f32.mrf.mxu0
  %v339 = vadd.f32 0.0, %v338
  %340 = vmatmul.f32.gmra.mxu0 %v178
  %v341 = vpop.f32.mrf.mxu0
  %v342 = vadd.f32 0.0, %v341
  %343 = vmatmul.f32.gmra.mxu0 %v181
  %v344 = vpop.f32.mrf.mxu0
  %v345 = vadd.f32 0.0, %v344
  %346 = vmatmul.f32.gmra.mxu0 %v184
  %v347 = vpop.f32.mrf.mxu0
  %v348 = vadd.f32 0.0, %v347
  %349 = vmatmul.f32.gmra.mxu0 %v187
  %v350 = vpop.f32.mrf.mxu0
  %v351 = vadd.f32 0.0, %v350
  %352 = vmatmul.f32.gmra.mxu0 %v190
  %v353 = vpop.f32.mrf.mxu0
  %v354 = vadd.f32 0.0, %v353
  %355 = vmatmul.f32.gmra.mxu0 %v193
  %v356 = vpop.f32.mrf.mxu0
  %v357 = vadd.f32 0.0, %v356
  %358 = vmatmul.f32.gmra.mxu0 %v196
  %v359 = vpop.f32.mrf.mxu0
  %v360 = vadd.f32 0.0, %v359
  %361 = vmatmul.f32.gmra.mxu0 %v199
  %v362 = vpop.f32.mrf.mxu0
  %v363 = vadd.f32 0.0, %v362
  %364 = vmatmul.f32.gmra.mxu0 %v202
  %v365 = vpop.f32.mrf.mxu0
  %v366 = vadd.f32 0.0, %v365
  %367 = vmatmul.f32.gmra.mxu0 %v205
  %v368 = vpop.f32.mrf.mxu0
  %v369 = vadd.f32 0.0, %v368
  %370 = vmatmul.f32.gmra.mxu0 %v208
  %v371 = vpop.f32.mrf.mxu0
  %v372 = vadd.f32 0.0, %v371
  %373 = vmatmul.f32.gmra.mxu0 %v211
  %v374 = vpop.f32.mrf.mxu0
  %v375 = vadd.f32 0.0, %v374
  %376 = vdwg.mxu0
  %426 = vrot.lane.b32.xlu0 %v231, 96
  %v427 = vpop.permute.xlu0 %426
  %428 = vrot.lane.b32.xlu0 %v234, 96
  %v429 = vpop.permute.xlu0 %428
  %430 = vrot.lane.b32.xlu0 %v237, 96
  %v431 = vpop.permute.xlu0 %430
  %432 = vrot.lane.b32.xlu0 %v240, 96
  %v433 = vpop.permute.xlu0 %432
  %434 = vrot.lane.b32.xlu0 %v243, 96
  %v435 = vpop.permute.xlu0 %434
  %436 = vrot.lane.b32.xlu0 %v246, 96
  %v437 = vpop.permute.xlu0 %436
  %438 = vrot.lane.b32.xlu0 %v249, 96
  %v439 = vpop.permute.xlu0 %438
  %440 = vrot.lane.b32.xlu0 %v252, 96
  %v441 = vpop.permute.xlu0 %440
  %442 = vrot.lane.b32.xlu0 %v255, 96
  %v443 = vpop.permute.xlu0 %442
  %444 = vrot.lane.b32.xlu0 %v258, 96
  %v445 = vpop.permute.xlu0 %444
  %446 = vrot.lane.b32.xlu0 %v261, 96
  %v447 = vpop.permute.xlu0 %446
  %448 = vrot.lane.b32.xlu0 %v264, 96
  %v449 = vpop.permute.xlu0 %448
  %450 = vrot.lane.b32.xlu0 %v267, 96
  %v451 = vpop.permute.xlu0 %450
  %452 = vrot.lane.b32.xlu0 %v270, 96
  %v453 = vpop.permute.xlu0 %452
  %454 = vrot.lane.b32.xlu0 %v273, 96
  %v455 = vpop.permute.xlu0 %454
  %456 = vrot.lane.b32.xlu0 %v276, 96
  %v457 = vpop.permute.xlu0 %456
  %458 = vrot.lane.b32.xlu0 %v279, 96
  %v459 = vpop.permute.xlu0 %458
  %460 = vrot.lane.b32.xlu0 %v282, 96
  %v461 = vpop.permute.xlu0 %460
  %462 = vrot.lane.b32.xlu0 %v285, 96
  %v463 = vpop.permute.xlu0 %462
  %464 = vrot.lane.b32.xlu0 %v288, 96
  %v465 = vpop.permute.xlu0 %464
  %466 = vrot.lane.b32.xlu0 %v291, 96
  %v467 = vpop.permute.xlu0 %466
  %468 = vrot.lane.b32.xlu0 %v294, 96
  %v469 = vpop.permute.xlu0 %468
  %470 = vrot.lane.b32.xlu0 %v297, 96
  %v471 = vpop.permute.xlu0 %470
  %472 = vrot.lane.b32.xlu0 %v300, 96
  %v473 = vpop.permute.xlu0 %472
  %474 = vrot.lane.b32.xlu0 %v303, 96
  %v475 = vpop.permute.xlu0 %474
  %476 = vrot.lane.b32.xlu0 %v306, 96
  %v477 = vpop.permute.xlu0 %476
  %478 = vrot.lane.b32.xlu0 %v309, 96
  %v479 = vpop.permute.xlu0 %478
  %480 = vrot.lane.b32.xlu0 %v312, 96
  %v481 = vpop.permute.xlu0 %480
  %482 = vrot.lane.b32.xlu0 %v315, 96
  %v483 = vpop.permute.xlu0 %482
  %484 = vrot.lane.b32.xlu0 %v318, 96
  %v485 = vpop.permute.xlu0 %484
  %486 = vrot.lane.b32.xlu0 %v321, 96
  %v487 = vpop.permute.xlu0 %486
  %488 = vrot.lane.b32.xlu0 %v324, 96
  %v489 = vpop.permute.xlu0 %488
  %490 = vrot.lane.b32.xlu0 %v327, 96
  %v491 = vpop.permute.xlu0 %490
  %492 = vrot.lane.b32.xlu0 %v330, 96
  %v493 = vpop.permute.xlu0 %492
  %494 = vrot.lane.b32.xlu0 %v333, 96
  %v495 = vpop.permute.xlu0 %494
  %496 = vrot.lane.b32.xlu0 %v336, 96
  %v497 = vpop.permute.xlu0 %496
  %498 = vrot.lane.b32.xlu0 %v339, 96
  %v499 = vpop.permute.xlu0 %498
  %500 = vrot.lane.b32.xlu0 %v342, 96
  %v501 = vpop.permute.xlu0 %500
  %502 = vrot.lane.b32.xlu0 %v345, 96
  %v503 = vpop.permute.xlu0 %502
  %504 = vrot.lane.b32.xlu0 %v348, 96
  %v505 = vpop.permute.xlu0 %504
  %506 = vrot.lane.b32.xlu0 %v351, 96
  %v507 = vpop.permute.xlu0 %506
  %508 = vrot.lane.b32.xlu0 %v354, 96
  %v509 = vpop.permute.xlu0 %508
  %510 = vrot.lane.b32.xlu0 %v357, 96
  %v511 = vpop.permute.xlu0 %510
  %512 = vrot.lane.b32.xlu0 %v360, 96
  %v513 = vpop.permute.xlu0 %512
  %514 = vrot.lane.b32.xlu0 %v363, 96
  %v515 = vpop.permute.xlu0 %514
  %516 = vrot.lane.b32.xlu0 %v366, 96
  %v517 = vpop.permute.xlu0 %516
  %518 = vrot.lane.b32.xlu0 %v369, 96
  %v519 = vpop.permute.xlu0 %518
  %520 = vrot.lane.b32.xlu0 %v372, 96
  %v521 = vpop.permute.xlu0 %520
  %522 = vrot.lane.b32.xlu0 %v375, 96
  %v523 = vpop.permute.xlu0 %522
  %v573 = vmax.f32 %v231, %v427
  %v574 = vmax.f32 %v234, %v429
  %v575 = vmax.f32 %v237, %v431
  %v576 = vmax.f32 %v240, %v433
  %v577 = vmax.f32 %v243, %v435
  %v578 = vmax.f32 %v246, %v437
  %v579 = vmax.f32 %v249, %v439
  %v580 = vmax.f32 %v252, %v441
  %v581 = vmax.f32 %v255, %v443
  %v582 = vmax.f32 %v258, %v445
  %v583 = vmax.f32 %v261, %v447
  %v584 = vmax.f32 %v264, %v449
  %v585 = vmax.f32 %v267, %v451
  %v586 = vmax.f32 %v270, %v453
  %v587 = vmax.f32 %v273, %v455
  %v588 = vmax.f32 %v276, %v457
  %v589 = vmax.f32 %v279, %v459
  %v590 = vmax.f32 %v282, %v461
  %v591 = vmax.f32 %v285, %v463
  %v592 = vmax.f32 %v288, %v465
  %v593 = vmax.f32 %v291, %v467
  %v594 = vmax.f32 %v294, %v469
  %v595 = vmax.f32 %v297, %v471
  %v596 = vmax.f32 %v300, %v473
  %v597 = vmax.f32 %v303, %v475
  %v598 = vmax.f32 %v306, %v477
  %v599 = vmax.f32 %v309, %v479
  %v600 = vmax.f32 %v312, %v481
  %v601 = vmax.f32 %v315, %v483
  %v602 = vmax.f32 %v318, %v485
  %v603 = vmax.f32 %v321, %v487
  %v604 = vmax.f32 %v324, %v489
  %v605 = vmax.f32 %v327, %v491
  %v606 = vmax.f32 %v330, %v493
  %v607 = vmax.f32 %v333, %v495
  %v608 = vmax.f32 %v336, %v497
  %v609 = vmax.f32 %v339, %v499
  %v610 = vmax.f32 %v342, %v501
  %v611 = vmax.f32 %v345, %v503
  %v612 = vmax.f32 %v348, %v505
  %v613 = vmax.f32 %v351, %v507
  %v614 = vmax.f32 %v354, %v509
  %v615 = vmax.f32 %v357, %v511
  %v616 = vmax.f32 %v360, %v513
  %v617 = vmax.f32 %v363, %v515
  %v618 = vmax.f32 %v366, %v517
  %v619 = vmax.f32 %v369, %v519
  %v620 = vmax.f32 %v372, %v521
  %v621 = vmax.f32 %v375, %v523
  %671 = vrot.lane.b32.xlu0 %v573, 64
  %v672 = vpop.permute.xlu0 %671
  %673 = vrot.lane.b32.xlu0 %v574, 64
  %v674 = vpop.permute.xlu0 %673
  %675 = vrot.lane.b32.xlu0 %v575, 64
  %v676 = vpop.permute.xlu0 %675
  %677 = vrot.lane.b32.xlu0 %v576, 64
  %v678 = vpop.permute.xlu0 %677
  %679 = vrot.lane.b32.xlu0 %v577, 64
  %v680 = vpop.permute.xlu0 %679
  %681 = vrot.lane.b32.xlu0 %v578, 64
  %v682 = vpop.permute.xlu0 %681
  %683 = vrot.lane.b32.xlu0 %v579, 64
  %v684 = vpop.permute.xlu0 %683
  %685 = vrot.lane.b32.xlu0 %v580, 64
  %v686 = vpop.permute.xlu0 %685
  %687 = vrot.lane.b32.xlu0 %v581, 64
  %v688 = vpop.permute.xlu0 %687
  %689 = vrot.lane.b32.xlu0 %v582, 64
  %v690 = vpop.permute.xlu0 %689
  %691 = vrot.lane.b32.xlu0 %v583, 64
  %v692 = vpop.permute.xlu0 %691
  %693 = vrot.lane.b32.xlu0 %v584, 64
  %v694 = vpop.permute.xlu0 %693
  %695 = vrot.lane.b32.xlu0 %v585, 64
  %v696 = vpop.permute.xlu0 %695
  %697 = vrot.lane.b32.xlu0 %v586, 64
  %v698 = vpop.permute.xlu0 %697
  %699 = vrot.lane.b32.xlu0 %v587, 64
  %v700 = vpop.permute.xlu0 %699
  %701 = vrot.lane.b32.xlu0 %v588, 64
  %v702 = vpop.permute.xlu0 %701
  %703 = vrot.lane.b32.xlu0 %v589, 64
  %v704 = vpop.permute.xlu0 %703
  %705 = vrot.lane.b32.xlu0 %v590, 64
  %v706 = vpop.permute.xlu0 %705
  %707 = vrot.lane.b32.xlu0 %v591, 64
  %v708 = vpop.permute.xlu0 %707
  %709 = vrot.lane.b32.xlu0 %v592, 64
  %v710 = vpop.permute.xlu0 %709
  %711 = vrot.lane.b32.xlu0 %v593, 64
  %v712 = vpop.permute.xlu0 %711
  %713 = vrot.lane.b32.xlu0 %v594, 64
  %v714 = vpop.permute.xlu0 %713
  %715 = vrot.lane.b32.xlu0 %v595, 64
  %v716 = vpop.permute.xlu0 %715
  %717 = vrot.lane.b32.xlu0 %v596, 64
  %v718 = vpop.permute.xlu0 %717
  %719 = vrot.lane.b32.xlu0 %v597, 64
  %v720 = vpop.permute.xlu0 %719
  %721 = vrot.lane.b32.xlu0 %v598, 64
  %v722 = vpop.permute.xlu0 %721
  %723 = vrot.lane.b32.xlu0 %v599, 64
  %v724 = vpop.permute.xlu0 %723
  %725 = vrot.lane.b32.xlu0 %v600, 64
  %v726 = vpop.permute.xlu0 %725
  %727 = vrot.lane.b32.xlu0 %v601, 64
  %v728 = vpop.permute.xlu0 %727
  %729 = vrot.lane.b32.xlu0 %v602, 64
  %v730 = vpop.permute.xlu0 %729
  %731 = vrot.lane.b32.xlu0 %v603, 64
  %v732 = vpop.permute.xlu0 %731
  %733 = vrot.lane.b32.xlu0 %v604, 64
  %v734 = vpop.permute.xlu0 %733
  %735 = vrot.lane.b32.xlu0 %v605, 64
  %v736 = vpop.permute.xlu0 %735
  %737 = vrot.lane.b32.xlu0 %v606, 64
  %v738 = vpop.permute.xlu0 %737
  %739 = vrot.lane.b32.xlu0 %v607, 64
  %v740 = vpop.permute.xlu0 %739
  %741 = vrot.lane.b32.xlu0 %v608, 64
  %v742 = vpop.permute.xlu0 %741
  %743 = vrot.lane.b32.xlu0 %v609, 64
  %v744 = vpop.permute.xlu0 %743
  %745 = vrot.lane.b32.xlu0 %v610, 64
  %v746 = vpop.permute.xlu0 %745
  %747 = vrot.lane.b32.xlu0 %v611, 64
  %v748 = vpop.permute.xlu0 %747
  %749 = vrot.lane.b32.xlu0 %v612, 64
  %v750 = vpop.permute.xlu0 %749
  %751 = vrot.lane.b32.xlu0 %v613, 64
  %v752 = vpop.permute.xlu0 %751
  %753 = vrot.lane.b32.xlu0 %v614, 64
  %v754 = vpop.permute.xlu0 %753
  %755 = vrot.lane.b32.xlu0 %v615, 64
  %v756 = vpop.permute.xlu0 %755
  %757 = vrot.lane.b32.xlu0 %v616, 64
  %v758 = vpop.permute.xlu0 %757
  %759 = vrot.lane.b32.xlu0 %v617, 64
  %v760 = vpop.permute.xlu0 %759
  %761 = vrot.lane.b32.xlu0 %v618, 64
  %v762 = vpop.permute.xlu0 %761
  %763 = vrot.lane.b32.xlu0 %v619, 64
  %v764 = vpop.permute.xlu0 %763
  %765 = vrot.lane.b32.xlu0 %v620, 64
  %v766 = vpop.permute.xlu0 %765
  %767 = vrot.lane.b32.xlu0 %v621, 64
  %v768 = vpop.permute.xlu0 %767
  %v818 = vmax.f32 %v573, %v672
  %v819 = vmax.f32 %v574, %v674
  %v820 = vmax.f32 %v575, %v676
  %v821 = vmax.f32 %v576, %v678
  %v822 = vmax.f32 %v577, %v680
  %v823 = vmax.f32 %v578, %v682
  %v824 = vmax.f32 %v579, %v684
  %v825 = vmax.f32 %v580, %v686
  %v826 = vmax.f32 %v581, %v688
  %v827 = vmax.f32 %v582, %v690
  %v828 = vmax.f32 %v583, %v692
  %v829 = vmax.f32 %v584, %v694
  %v830 = vmax.f32 %v585, %v696
  %v831 = vmax.f32 %v586, %v698
  %v832 = vmax.f32 %v587, %v700
  %v833 = vmax.f32 %v588, %v702
  %v834 = vmax.f32 %v589, %v704
  %v835 = vmax.f32 %v590, %v706
  %v836 = vmax.f32 %v591, %v708
  %v837 = vmax.f32 %v592, %v710
  %v838 = vmax.f32 %v593, %v712
  %v839 = vmax.f32 %v594, %v714
  %v840 = vmax.f32 %v595, %v716
  %v841 = vmax.f32 %v596, %v718
  %v842 = vmax.f32 %v597, %v720
  %v843 = vmax.f32 %v598, %v722
  %v844 = vmax.f32 %v599, %v724
  %v845 = vmax.f32 %v600, %v726
  %v846 = vmax.f32 %v601, %v728
  %v847 = vmax.f32 %v602, %v730
  %v848 = vmax.f32 %v603, %v732
  %v849 = vmax.f32 %v604, %v734
  %v850 = vmax.f32 %v605, %v736
  %v851 = vmax.f32 %v606, %v738
  %v852 = vmax.f32 %v607, %v740
  %v853 = vmax.f32 %v608, %v742
  %v854 = vmax.f32 %v609, %v744
  %v855 = vmax.f32 %v610, %v746
  %v856 = vmax.f32 %v611, %v748
  %v857 = vmax.f32 %v612, %v750
  %v858 = vmax.f32 %v613, %v752
  %v859 = vmax.f32 %v614, %v754
  %v860 = vmax.f32 %v615, %v756
  %v861 = vmax.f32 %v616, %v758
  %v862 = vmax.f32 %v617, %v760
  %v863 = vmax.f32 %v618, %v762
  %v864 = vmax.f32 %v619, %v764
  %v865 = vmax.f32 %v620, %v766
  %v866 = vmax.f32 %v621, %v768
  %v867 = vld [vmem:[%s2] sm:$0x1]
  %v869 = vperm.slane %v867, 0
  %v871 = vadd.f32 %v818, %v869
  %v872 = vadd.f32 %v819, %v869
  %v873 = vadd.f32 %v820, %v869
  %v874 = vadd.f32 %v821, %v869
  %v875 = vadd.f32 %v822, %v869
  %v876 = vadd.f32 %v823, %v869
  %v877 = vadd.f32 %v824, %v869
  %v878 = vadd.f32 %v825, %v869
  %v879 = vadd.f32 %v826, %v869
  %v880 = vadd.f32 %v827, %v869
  %v881 = vadd.f32 %v828, %v869
  %v882 = vadd.f32 %v829, %v869
  %v883 = vadd.f32 %v830, %v869
  %v884 = vadd.f32 %v831, %v869
  %v885 = vadd.f32 %v832, %v869
  %v886 = vadd.f32 %v833, %v869
  %v887 = vadd.f32 %v834, %v869
  %v888 = vadd.f32 %v835, %v869
  %v889 = vadd.f32 %v836, %v869
  %v890 = vadd.f32 %v837, %v869
  %v891 = vadd.f32 %v838, %v869
  %v892 = vadd.f32 %v839, %v869
  %v893 = vadd.f32 %v840, %v869
  %v894 = vadd.f32 %v841, %v869
  %v895 = vadd.f32 %v842, %v869
  %v896 = vadd.f32 %v843, %v869
  %v897 = vadd.f32 %v844, %v869
  %v898 = vadd.f32 %v845, %v869
  %v899 = vadd.f32 %v846, %v869
  %v900 = vadd.f32 %v847, %v869
  %v901 = vadd.f32 %v848, %v869
  %v902 = vadd.f32 %v849, %v869
  %v903 = vadd.f32 %v850, %v869
  %v904 = vadd.f32 %v851, %v869
  %v905 = vadd.f32 %v852, %v869
  %v906 = vadd.f32 %v853, %v869
  %v907 = vadd.f32 %v854, %v869
  %v908 = vadd.f32 %v855, %v869
  %v909 = vadd.f32 %v856, %v869
  %v910 = vadd.f32 %v857, %v869
  %v911 = vadd.f32 %v858, %v869
  %v912 = vadd.f32 %v859, %v869
  %v913 = vadd.f32 %v860, %v869
  %v914 = vadd.f32 %v861, %v869
  %v915 = vadd.f32 %v862, %v869
  %v916 = vadd.f32 %v863, %v869
  %v917 = vadd.f32 %v864, %v869
  %v918 = vadd.f32 %v865, %v869
  %v919 = vadd.f32 %v866, %v869
  %v920 = vmax.f32 %v871, 0.0
  %v921 = vmax.f32 %v872, 0.0
  %v922 = vmax.f32 %v873, 0.0
  %v923 = vmax.f32 %v874, 0.0
  %v924 = vmax.f32 %v875, 0.0
  %v925 = vmax.f32 %v876, 0.0
  %v926 = vmax.f32 %v877, 0.0
  %v927 = vmax.f32 %v878, 0.0
  %v928 = vmax.f32 %v879, 0.0
  %v929 = vmax.f32 %v880, 0.0
  %v930 = vmax.f32 %v881, 0.0
  %v931 = vmax.f32 %v882, 0.0
  %v932 = vmax.f32 %v883, 0.0
  %v933 = vmax.f32 %v884, 0.0
  %v934 = vmax.f32 %v885, 0.0
  %v935 = vmax.f32 %v886, 0.0
  %v936 = vmax.f32 %v887, 0.0
  %v937 = vmax.f32 %v888, 0.0
  %v938 = vmax.f32 %v889, 0.0
  %v939 = vmax.f32 %v890, 0.0
  %v940 = vmax.f32 %v891, 0.0
  %v941 = vmax.f32 %v892, 0.0
  %v942 = vmax.f32 %v893, 0.0
  %v943 = vmax.f32 %v894, 0.0
  %v944 = vmax.f32 %v895, 0.0
  %v945 = vmax.f32 %v896, 0.0
  %v946 = vmax.f32 %v897, 0.0
  %v947 = vmax.f32 %v898, 0.0
  %v948 = vmax.f32 %v899, 0.0
  %v949 = vmax.f32 %v900, 0.0
  %v950 = vmax.f32 %v901, 0.0
  %v951 = vmax.f32 %v902, 0.0
  %v952 = vmax.f32 %v903, 0.0
  %v953 = vmax.f32 %v904, 0.0
  %v954 = vmax.f32 %v905, 0.0
  %v955 = vmax.f32 %v906, 0.0
  %v956 = vmax.f32 %v907, 0.0
  %v957 = vmax.f32 %v908, 0.0
  %v958 = vmax.f32 %v909, 0.0
  %v959 = vmax.f32 %v910, 0.0
  %v960 = vmax.f32 %v911, 0.0
  %v961 = vmax.f32 %v912, 0.0
  %v962 = vmax.f32 %v913, 0.0
  %v963 = vmax.f32 %v914, 0.0
  %v964 = vmax.f32 %v915, 0.0
  %v965 = vmax.f32 %v916, 0.0
  %v966 = vmax.f32 %v917, 0.0
  %v967 = vmax.f32 %v918, 0.0
  %v968 = vmax.f32 %v919, 0.0
  %vm969 = vcmask 261120
  %970 = vst.msk [vmem:[%s3] sm:$0xff] %vm969, %v920
  %971 = vst.msk [vmem:[%s3 + $0x8] sm:$0xff] %vm969, %v921
  %972 = vst.msk [vmem:[%s3 + $0x10] sm:$0xff] %vm969, %v922
  %973 = vst.msk [vmem:[%s3 + $0x18] sm:$0xff] %vm969, %v923
  %974 = vst.msk [vmem:[%s3 + $0x20] sm:$0xff] %vm969, %v924
  %975 = vst.msk [vmem:[%s3 + $0x28] sm:$0xff] %vm969, %v925
  %976 = vst.msk [vmem:[%s3 + $0x30] sm:$0xff] %vm969, %v926
  %977 = vst.msk [vmem:[%s3 + $0x38] sm:$0xff] %vm969, %v927
  %978 = vst.msk [vmem:[%s3 + $0x40] sm:$0xff] %vm969, %v928
  %979 = vst.msk [vmem:[%s3 + $0x48] sm:$0xff] %vm969, %v929
  %980 = vst.msk [vmem:[%s3 + $0x50] sm:$0xff] %vm969, %v930
  %981 = vst.msk [vmem:[%s3 + $0x58] sm:$0xff] %vm969, %v931
  %982 = vst.msk [vmem:[%s3 + $0x60] sm:$0xff] %vm969, %v932
  %983 = vst.msk [vmem:[%s3 + $0x68] sm:$0xff] %vm969, %v933
  %984 = vst.msk [vmem:[%s3 + $0x70] sm:$0xff] %vm969, %v934
  %985 = vst.msk [vmem:[%s3 + $0x78] sm:$0xff] %vm969, %v935
  %986 = vst.msk [vmem:[%s3 + $0x80] sm:$0xff] %vm969, %v936
  %987 = vst.msk [vmem:[%s3 + $0x88] sm:$0xff] %vm969, %v937
  %988 = vst.msk [vmem:[%s3 + $0x90] sm:$0xff] %vm969, %v938
  %989 = vst.msk [vmem:[%s3 + $0x98] sm:$0xff] %vm969, %v939
  %990 = vst.msk [vmem:[%s3 + $0xa0] sm:$0xff] %vm969, %v940
  %991 = vst.msk [vmem:[%s3 + $0xa8] sm:$0xff] %vm969, %v941
  %992 = vst.msk [vmem:[%s3 + $0xb0] sm:$0xff] %vm969, %v942
  %993 = vst.msk [vmem:[%s3 + $0xb8] sm:$0xff] %vm969, %v943
  %994 = vst.msk [vmem:[%s3 + $0xc0] sm:$0xff] %vm969, %v944
  %995 = vst.msk [vmem:[%s3 + $0xc8] sm:$0xff] %vm969, %v945
  %996 = vst.msk [vmem:[%s3 + $0xd0] sm:$0xff] %vm969, %v946
  %997 = vst.msk [vmem:[%s3 + $0xd8] sm:$0xff] %vm969, %v947
  %998 = vst.msk [vmem:[%s3 + $0xe0] sm:$0xff] %vm969, %v948
  %999 = vst.msk [vmem:[%s3 + $0xe8] sm:$0xff] %vm969, %v949
  %1000 = vst.msk [vmem:[%s3 + $0xf0] sm:$0xff] %vm969, %v950
  %1001 = vst.msk [vmem:[%s3 + $0xf8] sm:$0xff] %vm969, %v951
  %1002 = vst.msk [vmem:[%s3 + $0x100] sm:$0xff] %vm969, %v952
  %1003 = vst.msk [vmem:[%s3 + $0x108] sm:$0xff] %vm969, %v953
  %1004 = vst.msk [vmem:[%s3 + $0x110] sm:$0xff] %vm969, %v954
  %1005 = vst.msk [vmem:[%s3 + $0x118] sm:$0xff] %vm969, %v955
  %1006 = vst.msk [vmem:[%s3 + $0x120] sm:$0xff] %vm969, %v956
  %1007 = vst.msk [vmem:[%s3 + $0x128] sm:$0xff] %vm969, %v957
  %1008 = vst.msk [vmem:[%s3 + $0x130] sm:$0xff] %vm969, %v958
  %1009 = vst.msk [vmem:[%s3 + $0x138] sm:$0xff] %vm969, %v959
  %1010 = vst.msk [vmem:[%s3 + $0x140] sm:$0xff] %vm969, %v960
  %1011 = vst.msk [vmem:[%s3 + $0x148] sm:$0xff] %vm969, %v961
  %1012 = vst.msk [vmem:[%s3 + $0x150] sm:$0xff] %vm969, %v962
  %1013 = vst.msk [vmem:[%s3 + $0x158] sm:$0xff] %vm969, %v963
  %1014 = vst.msk [vmem:[%s3 + $0x160] sm:$0xff] %vm969, %v964
  %1015 = vst.msk [vmem:[%s3 + $0x168] sm:$0xff] %vm969, %v965
  %1016 = vst.msk [vmem:[%s3 + $0x170] sm:$0xff] %vm969, %v966
  %1017 = vst.msk [vmem:[%s3 + $0x178] sm:$0xff] %vm969, %v967
  %1018 = vst.msk [vmem:[%s3 + $0x180] sm:$0xff] %vm969, %v968
  // Predicated region
  $region14: #{digit_classifier_forward.3} parent=0 // pred_check
    _
  $region15: #{digit_classifier_forward.3} parent=0 // pred_check_branch
    %1020 = sbr.rel (0) target = $region17
  $region16: #{digit_classifier_forward.3} parent=0 // pred_region
    _
  $region17: #{digit_classifier_forward.3} parent=0 // pred_fallthru
    _
  // Predicated region
  $region18: #{digit_classifier_forward.3} parent=0 // pred_check
    _
  $region19: #{digit_classifier_forward.3} parent=0 // pred_check_branch
    %1022 = sbr.rel (0) target = $region21
  $region20: #{digit_classifier_forward.3} parent=0 // pred_region
    _
  $region21: #{digit_classifier_forward.3} parent=0 // pred_fallthru
    _

// kernel: digit_classifier_forward.4
$region0: #{digit_classifier_forward.4}
  #allocation0 [shape = 'u32[]', space=smem, size = 0x4, offset = 0x4, fixed_abs, tag = 'smem constant byte address 0x4 - core index']
  #allocation1 [shape = 'u32[72,128]{1,0:T(1,128)}', space=vmem, size = 0x9000, scoped, tag = 'internal scratch']
  %s0 = inlined_call_operand.vmem [shape: f32[98,512], index: 0, kind: input, shape index: {}]
  %s1 = inlined_call_operand.vmem [shape: f32[512,256], index: 1, kind: input, shape index: {}]
  %s2 = inlined_call_operand.vmem [shape: f32[1,64], index: 2, kind: input, shape index: {}]
  %s3 = inlined_call_operand.vmem [shape: f32[98,64], index: 3, kind: output, shape index: {}]
  %s4 = sld [smem:[#allocation0]]
  $region22: #{digit_classifier_forward.4} parent=0
    _
  %s6 = ssub.s32 1, %s4
  %s7 = scalar_select 0, %s6, %s4
  // Predicated region
  $region2: #{digit_classifier_forward.4} parent=0 // pred_check
    _
  $region3: #{digit_classifier_forward.4} parent=0 // pred_check_branch
    %9 = sbr.rel (0) target = $region5
  $region4: #{digit_classifier_forward.4} parent=0 // pred_region
    _
  $region5: #{digit_classifier_forward.4} parent=0 // pred_fallthru
    _
  // Predicated region
  $region6: #{digit_classifier_forward.4} parent=0 // pred_check
    _
  $region7: #{digit_classifier_forward.4} parent=0 // pred_check_branch
    %11 = sbr.rel (0) target = $region9
  $region8: #{digit_classifier_forward.4} parent=0 // pred_region
    _
  $region9: #{digit_classifier_forward.4} parent=0 // pred_fallthru
    _
  // Predicated region
  $region10: #{digit_classifier_forward.4} parent=0 // pred_check
    _
  $region11: #{digit_classifier_forward.4} parent=0 // pred_check_branch
    %13 = sbr.rel (0) target = $region13
  $region12: #{digit_classifier_forward.4} parent=0 // pred_region
    _
  $region13: #{digit_classifier_forward.4} parent=0 // pred_fallthru
    _
  %v14 = vld [vmem:[%s0] sm:$0xff]
  %v15 = vld [vmem:[%s0 + $0x8] sm:$0xff]
  %v16 = vld [vmem:[%s0 + $0x10] sm:$0xff]
  %v17 = vld [vmem:[%s0 + $0x18] sm:$0xff]
  %v18 = vld [vmem:[%s0 + $0x20] sm:$0xff]
  %v19 = vld [vmem:[%s0 + $0x28] sm:$0xff]
  %v20 = vld [vmem:[%s0 + $0x30] sm:$0xff]
  %v21 = vld [vmem:[%s0 + $0x38] sm:$0xff]
  %v22 = vld [vmem:[%s0 + $0x40] sm:$0xff]
  %v23 = vld [vmem:[%s0 + $0x48] sm:$0xff]
  %v24 = vld [vmem:[%s0 + $0x50] sm:$0xff]
  %v25 = vld [vmem:[%s0 + $0x58] sm:$0xff]
  %v26 = vld [vmem:[%s0 + $0x60] sm:$0xff]
  %v27 = vld [vmem:[%s0 + $0x68] sm:$0xff]
  %v28 = vld [vmem:[%s0 + $0x70] sm:$0xff]
  %v29 = vld [vmem:[%s0 + $0x78] sm:$0xff]
  %v30 = vld [vmem:[%s0 + $0x80] sm:$0xff]
  %v31 = vld [vmem:[%s0 + $0x88] sm:$0xff]
  %v32 = vld [vmem:[%s0 + $0x90] sm:$0xff]
  %v33 = vld [vmem:[%s0 + $0x98] sm:$0xff]
  %v34 = vld [vmem:[%s0 + $0xa0] sm:$0xff]
  %v35 = vld [vmem:[%s0 + $0xa8] sm:$0xff]
  %v36 = vld [vmem:[%s0 + $0xb0] sm:$0xff]
  %v37 = vld [vmem:[%s0 + $0xb8] sm:$0xff]
  %v38 = vld [vmem:[%s0 + $0xc0] sm:$0xff]
  %v39 = vld [vmem:[%s0 + $0xc8] sm:$0xff]
  %v40 = vld [vmem:[%s0 + $0xd0] sm:$0xff]
  %v41 = vld [vmem:[%s0 + $0xd8] sm:$0xff]
  %v42 = vld [vmem:[%s0 + $0xe0] sm:$0xff]
  %v43 = vld [vmem:[%s0 + $0xe8] sm:$0xff]
  %v44 = vld [vmem:[%s0 + $0xf0] sm:$0xff]
  %v45 = vld [vmem:[%s0 + $0xf8] sm:$0xff]
  %v46 = vld [vmem:[%s0 + $0x100] sm:$0xff]
  %v47 = vld [vmem:[%s0 + $0x108] sm:$0xff]
  %v48 = vld [vmem:[%s0 + $0x110] sm:$0xff]
  %v49 = vld [vmem:[%s0 + $0x118] sm:$0xff]
  %v50 = vld [vmem:[%s0 + $0x120] sm:$0xff]
  %v51 = vld [vmem:[%s0 + $0x128] sm:$0xff]
  %v52 = vld [vmem:[%s0 + $0x130] sm:$0xff]
  %v53 = vld [vmem:[%s0 + $0x138] sm:$0xff]
  %v54 = vld [vmem:[%s0 + $0x140] sm:$0xff]
  %v55 = vld [vmem:[%s0 + $0x148] sm:$0xff]
  %v56 = vld [vmem:[%s0 + $0x150] sm:$0xff]
  %v57 = vld [vmem:[%s0 + $0x158] sm:$0xff]
  %v58 = vld [vmem:[%s0 + $0x160] sm:$0xff]
  %v59 = vld [vmem:[%s0 + $0x168] sm:$0xff]
  %v60 = vld [vmem:[%s0 + $0x170] sm:$0xff]
  %v61 = vld [vmem:[%s0 + $0x178] sm:$0xff]
  %v62 = vld [vmem:[%s0 + $0x180] sm:$0x3]
  %v63 = vld [vmem:[%s0 + $0x188] sm:$0x3]
  %v64 = vld [vmem:[%s0 + $0x190] sm:$0x3]
  %v65 = vld [vmem:[%s0 + $0x198] sm:$0x3]
  %v66 = vld [vmem:[%s1] sm:$0xff]
  %v67 = vld [vmem:[%s1 + $0x8] sm:$0xff]
  %v68 = vld [vmem:[%s1 + $0x10] sm:$0xff]
  %v69 = vld [vmem:[%s1 + $0x18] sm:$0xff]
  %v70 = vld [vmem:[%s1 + $0x20] sm:$0xff]
  %v71 = vld [vmem:[%s1 + $0x28] sm:$0xff]
  %v72 = vld [vmem:[%s1 + $0x30] sm:$0xff]
  %v73 = vld [vmem:[%s1 + $0x38] sm:$0xff]
  %v74 = vld [vmem:[%s1 + $0x40] sm:$0xff]
  %v75 = vld [vmem:[%s1 + $0x48] sm:$0xff]
  %v76 = vld [vmem:[%s1 + $0x50] sm:$0xff]
  %v77 = vld [vmem:[%s1 + $0x58] sm:$0xff]
  %v78 = vld [vmem:[%s1 + $0x60] sm:$0xff]
  %v79 = vld [vmem:[%s1 + $0x68] sm:$0xff]
  %v80 = vld [vmem:[%s1 + $0x70] sm:$0xff]
  %v81 = vld [vmem:[%s1 + $0x78] sm:$0xff]
  %v82 = vld [vmem:[%s1 + $0x80] sm:$0xff]
  %v83 = vld [vmem:[%s1 + $0x88] sm:$0xff]
  %v84 = vld [vmem:[%s1 + $0x90] sm:$0xff]
  %v85 = vld [vmem:[%s1 + $0x98] sm:$0xff]
  %v86 = vld [vmem:[%s1 + $0xa0] sm:$0xff]
  %v87 = vld [vmem:[%s1 + $0xa8] sm:$0xff]
  %v88 = vld [vmem:[%s1 + $0xb0] sm:$0xff]
  %v89 = vld [vmem:[%s1 + $0xb8] sm:$0xff]
  %v90 = vld [vmem:[%s1 + $0xc0] sm:$0xff]
  %v91 = vld [vmem:[%s1 + $0xc8] sm:$0xff]
  %v92 = vld [vmem:[%s1 + $0xd0] sm:$0xff]
  %v93 = vld [vmem:[%s1 + $0xd8] sm:$0xff]
  %v94 = vld [vmem:[%s1 + $0xe0] sm:$0xff]
  %v95 = vld [vmem:[%s1 + $0xe8] sm:$0xff]
  %v96 = vld [vmem:[%s1 + $0xf0] sm:$0xff]
  %v97 = vld [vmem:[%s1 + $0xf8] sm:$0xff]
  %v98 = vld [vmem:[%s1 + $0x100] sm:$0xff]
  %v99 = vld [vmem:[%s1 + $0x108] sm:$0xff]
  %v100 = vld [vmem:[%s1 + $0x110] sm:$0xff]
  %v101 = vld [vmem:[%s1 + $0x118] sm:$0xff]
  %v102 = vld [vmem:[%s1 + $0x120] sm:$0xff]
  %v103 = vld [vmem:[%s1 + $0x128] sm:$0xff]
  %v104 = vld [vmem:[%s1 + $0x130] sm:$0xff]
  %v105 = vld [vmem:[%s1 + $0x138] sm:$0xff]
  %v106 = vld [vmem:[%s1 + $0x140] sm:$0xff]
  %v107 = vld [vmem:[%s1 + $0x148] sm:$0xff]
  %v108 = vld [vmem:[%s1 + $0x150] sm:$0xff]
  %v109 = vld [vmem:[%s1 + $0x158] sm:$0xff]
  %v110 = vld [vmem:[%s1 + $0x160] sm:$0xff]
  %v111 = vld [vmem:[%s1 + $0x168] sm:$0xff]
  %v112 = vld [vmem:[%s1 + $0x170] sm:$0xff]
  %v113 = vld [vmem:[%s1 + $0x178] sm:$0xff]
  %v114 = vld [vmem:[%s1 + $0x180] sm:$0xff]
  %v115 = vld [vmem:[%s1 + $0x188] sm:$0xff]
  %v116 = vld [vmem:[%s1 + $0x190] sm:$0xff]
  %v117 = vld [vmem:[%s1 + $0x198] sm:$0xff]
  %v118 = vld [vmem:[%s1 + $0x1a0] sm:$0xff]
  %v119 = vld [vmem:[%s1 + $0x1a8] sm:$0xff]
  %v120 = vld [vmem:[%s1 + $0x1b0] sm:$0xff]
  %v121 = vld [vmem:[%s1 + $0x1b8] sm:$0xff]
  %v122 = vld [vmem:[%s1 + $0x1c0] sm:$0xff]
  %v123 = vld [vmem:[%s1 + $0x1c8] sm:$0xff]
  %v124 = vld [vmem:[%s1 + $0x1d0] sm:$0xff]
  %v125 = vld [vmem:[%s1 + $0x1d8] sm:$0xff]
  %v126 = vld [vmem:[%s1 + $0x1e0] sm:$0xff]
  %v127 = vld [vmem:[%s1 + $0x1e8] sm:$0xff]
  %v128 = vld [vmem:[%s1 + $0x1f0] sm:$0xff]
  %v129 = vld [vmem:[%s1 + $0x1f8] sm:$0xff]
  %v130 = vld [vmem:[%s1 + $0x200] sm:$0xff]
  %v131 = vld [vmem:[%s1 + $0x208] sm:$0xff]
  %v132 = vld [vmem:[%s1 + $0x210] sm:$0xff]
  %v133 = vld [vmem:[%s1 + $0x218] sm:$0xff]
  %v134 = vld [vmem:[%s1 + $0x220] sm:$0xff]
  %v135 = vld [vmem:[%s1 + $0x228] sm:$0xff]
  %v136 = vld [vmem:[%s1 + $0x230] sm:$0xff]
  %v137 = vld [vmem:[%s1 + $0x238] sm:$0xff]
  %v138 = vld [vmem:[%s1 + $0x240] sm:$0xff]
  %v139 = vld [vmem:[%s1 + $0x248] sm:$0xff]
  %v140 = vld [vmem:[%s1 + $0x250] sm:$0xff]
  %v141 = vld [vmem:[%s1 + $0x258] sm:$0xff]
  %v142 = vld [vmem:[%s1 + $0x260] sm:$0xff]
  %v143 = vld [vmem:[%s1 + $0x268] sm:$0xff]
  %v144 = vld [vmem:[%s1 + $0x270] sm:$0xff]
  %v145 = vld [vmem:[%s1 + $0x278] sm:$0xff]
  %v146 = vld [vmem:[%s1 + $0x280] sm:$0xff]
  %v147 = vld [vmem:[%s1 + $0x288] sm:$0xff]
  %v148 = vld [vmem:[%s1 + $0x290] sm:$0xff]
  %v149 = vld [vmem:[%s1 + $0x298] sm:$0xff]
  %v150 = vld [vmem:[%s1 + $0x2a0] sm:$0xff]
  %v151 = vld [vmem:[%s1 + $0x2a8] sm:$0xff]
  %v152 = vld [vmem:[%s1 + $0x2b0] sm:$0xff]
  %v153 = vld [vmem:[%s1 + $0x2b8] sm:$0xff]
  %v154 = vld [vmem:[%s1 + $0x2c0] sm:$0xff]
  %v155 = vld [vmem:[%s1 + $0x2c8] sm:$0xff]
  %v156 = vld [vmem:[%s1 + $0x2d0] sm:$0xff]
  %v157 = vld [vmem:[%s1 + $0x2d8] sm:$0xff]
  %v158 = vld [vmem:[%s1 + $0x2e0] sm:$0xff]
  %v159 = vld [vmem:[%s1 + $0x2e8] sm:$0xff]
  %v160 = vld [vmem:[%s1 + $0x2f0] sm:$0xff]
  %v161 = vld [vmem:[%s1 + $0x2f8] sm:$0xff]
  %v162 = vld [vmem:[%s1 + $0x300] sm:$0xff]
  %v163 = vld [vmem:[%s1 + $0x308] sm:$0xff]
  %v164 = vld [vmem:[%s1 + $0x310] sm:$0xff]
  %v165 = vld [vmem:[%s1 + $0x318] sm:$0xff]
  %v166 = vld [vmem:[%s1 + $0x320] sm:$0xff]
  %v167 = vld [vmem:[%s1 + $0x328] sm:$0xff]
  %v168 = vld [vmem:[%s1 + $0x330] sm:$0xff]
  %v169 = vld [vmem:[%s1 + $0x338] sm:$0xff]
  %v170 = vld [vmem:[%s1 + $0x340] sm:$0xff]
  %v171 = vld [vmem:[%s1 + $0x348] sm:$0xff]
  %v172 = vld [vmem:[%s1 + $0x350] sm:$0xff]
  %v173 = vld [vmem:[%s1 + $0x358] sm:$0xff]
  %v174 = vld [vmem:[%s1 + $0x360] sm:$0xff]
  %v175 = vld [vmem:[%s1 + $0x368] sm:$0xff]
  %v176 = vld [vmem:[%s1 + $0x370] sm:$0xff]
  %v177 = vld [vmem:[%s1 + $0x378] sm:$0xff]
  %v178 = vld [vmem:[%s1 + $0x380] sm:$0xff]
  %v179 = vld [vmem:[%s1 + $0x388] sm:$0xff]
  %v180 = vld [vmem:[%s1 + $0x390] sm:$0xff]
  %v181 = vld [vmem:[%s1 + $0x398] sm:$0xff]
  %v182 = vld [vmem:[%s1 + $0x3a0] sm:$0xff]
  %v183 = vld [vmem:[%s1 + $0x3a8] sm:$0xff]
  %v184 = vld [vmem:[%s1 + $0x3b0] sm:$0xff]
  %v185 = vld [vmem:[%s1 + $0x3b8] sm:$0xff]
  %v186 = vld [vmem:[%s1 + $0x3c0] sm:$0xff]
  %v187 = vld [vmem:[%s1 + $0x3c8] sm:$0xff]
  %v188 = vld [vmem:[%s1 + $0x3d0] sm:$0xff]
  %v189 = vld [vmem:[%s1 + $0x3d8] sm:$0xff]
  %v190 = vld [vmem:[%s1 + $0x3e0] sm:$0xff]
  %v191 = vld [vmem:[%s1 + $0x3e8] sm:$0xff]
  %v192 = vld [vmem:[%s1 + $0x3f0] sm:$0xff]
  %v193 = vld [vmem:[%s1 + $0x3f8] sm:$0xff]
  %194 = vmatpush.msra.mxu0 %v96
  %195 = vmatpush.msra.mxu0 %v94
  %196 = vmatpush.msra.mxu0 %v92
  %197 = vmatpush.msra.mxu0 %v90
  %198 = vmatpush.msra.mxu0 %v88
  %199 = vmatpush.msra.mxu0 %v86
  %200 = vmatpush.msra.mxu0 %v84
  %201 = vmatpush.msra.mxu0 %v82
  %202 = vmatpush.msra.mxu0 %v80
  %203 = vmatpush.msra.mxu0 %v78
  %204 = vmatpush.msra.mxu0 %v76
  %205 = vmatpush.msra.mxu0 %v74
  %206 = vmatpush.msra.mxu0 %v72
  %207 = vmatpush.msra.mxu0 %v70
  %208 = vmatpush.msra.mxu0 %v68
  %209 = vmatpush.msra.mxu0 %v66
  %210 = vmatmul.f32.gmra.mxu0 %v14
  %v211 = vpop.f32.mrf.mxu0
  %v212 = vadd.f32 0.0, %v211
  %213 = vmatmul.f32.gmra.mxu0 %v18
  %v214 = vpop.f32.mrf.mxu0
  %v215 = vadd.f32 0.0, %v214
  %216 = vmatmul.f32.gmra.mxu0 %v22
  %v217 = vpop.f32.mrf.mxu0
  %v218 = vadd.f32 0.0, %v217
  %219 = vmatmul.f32.gmra.mxu0 %v26
  %v220 = vpop.f32.mrf.mxu0
  %v221 = vadd.f32 0.0, %v220
  %222 = vmatmul.f32.gmra.mxu0 %v30
  %v223 = vpop.f32.mrf.mxu0
  %v224 = vadd.f32 0.0, %v223
  %225 = vmatmul.f32.gmra.mxu0 %v34
  %v226 = vpop.f32.mrf.mxu0
  %v227 = vadd.f32 0.0, %v226
  %228 = vmatmul.f32.gmra.mxu0 %v38
  %v229 = vpop.f32.mrf.mxu0
  %v230 = vadd.f32 0.0, %v229
  %231 = vmatmul.f32.gmra.mxu0 %v42
  %v232 = vpop.f32.mrf.mxu0
  %v233 = vadd.f32 0.0, %v232
  %234 = vmatmul.f32.gmra.mxu0 %v46
  %v235 = vpop.f32.mrf.mxu0
  %v236 = vadd.f32 0.0, %v235
  %237 = vmatmul.f32.gmra.mxu0 %v50
  %v238 = vpop.f32.mrf.mxu0
  %v239 = vadd.f32 0.0, %v238
  %240 = vmatmul.f32.gmra.mxu0 %v54
  %v241 = vpop.f32.mrf.mxu0
  %v242 = vadd.f32 0.0, %v241
  %243 = vmatmul.f32.gmra.mxu0 %v58
  %v244 = vpop.f32.mrf.mxu0
  %v245 = vadd.f32 0.0, %v244
  %246 = vmatmul.f32.gmra.mxu0 %v62
  %v247 = vpop.f32.mrf.mxu0
  %v248 = vadd.f32 0.0, %v247
  %249 = vdwg.mxu0
  %250 = vmatpush.msra.mxu0 %v128
  %251 = vmatpush.msra.mxu0 %v126
  %252 = vmatpush.msra.mxu0 %v124
  %253 = vmatpush.msra.mxu0 %v122
  %254 = vmatpush.msra.mxu0 %v120
  %255 = vmatpush.msra.mxu0 %v118
  %256 = vmatpush.msra.mxu0 %v116
  %257 = vmatpush.msra.mxu0 %v114
  %258 = vmatpush.msra.mxu0 %v112
  %259 = vmatpush.msra.mxu0 %v110
  %260 = vmatpush.msra.mxu0 %v108
  %261 = vmatpush.msra.mxu0 %v106
  %262 = vmatpush.msra.mxu0 %v104
  %263 = vmatpush.msra.mxu0 %v102
  %264 = vmatpush.msra.mxu0 %v100
  %265 = vmatpush.msra.mxu0 %v98
  %266 = vmatmul.f32.gmra.mxu0 %v15
  %v267 = vpop.f32.mrf.mxu0
  %v268 = vadd.f32 %v212, %v267
  %269 = vmatmul.f32.gmra.mxu0 %v19
  %v270 = vpop.f32.mrf.mxu0
  %v271 = vadd.f32 %v215, %v270
  %272 = vmatmul.f32.gmra.mxu0 %v23
  %v273 = vpop.f32.mrf.mxu0
  %v274 = vadd.f32 %v218, %v273
  %275 = vmatmul.f32.gmra.mxu0 %v27
  %v276 = vpop.f32.mrf.mxu0
  %v277 = vadd.f32 %v221, %v276
  %278 = vmatmul.f32.gmra.mxu0 %v31
  %v279 = vpop.f32.mrf.mxu0
  %v280 = vadd.f32 %v224, %v279
  %281 = vmatmul.f32.gmra.mxu0 %v35
  %v282 = vpop.f32.mrf.mxu0
  %v283 = vadd.f32 %v227, %v282
  %284 = vmatmul.f32.gmra.mxu0 %v39
  %v285 = vpop.f32.mrf.mxu0
  %v286 = vadd.f32 %v230, %v285
  %287 = vmatmul.f32.gmra.mxu0 %v43
  %v288 = vpop.f32.mrf.mxu0
  %v289 = vadd.f32 %v233, %v288
  %290 = vmatmul.f32.gmra.mxu0 %v47
  %v291 = vpop.f32.mrf.mxu0
  %v292 = vadd.f32 %v236, %v291
  %293 = vmatmul.f32.gmra.mxu0 %v51
  %v294 = vpop.f32.mrf.mxu0
  %v295 = vadd.f32 %v239, %v294
  %296 = vmatmul.f32.gmra.mxu0 %v55
  %v297 = vpop.f32.mrf.mxu0
  %v298 = vadd.f32 %v242, %v297
  %299 = vmatmul.f32.gmra.mxu0 %v59
  %v300 = vpop.f32.mrf.mxu0
  %v301 = vadd.f32 %v245, %v300
  %302 = vmatmul.f32.gmra.mxu0 %v63
  %v303 = vpop.f32.mrf.mxu0
  %v304 = vadd.f32 %v248, %v303
  %305 = vdwg.mxu0
  %306 = vmatpush.msra.mxu0 %v160
  %307 = vmatpush.msra.mxu0 %v158
  %308 = vmatpush.msra.mxu0 %v156
  %309 = vmatpush.msra.mxu0 %v154
  %310 = vmatpush.msra.mxu0 %v152
  %311 = vmatpush.msra.mxu0 %v150
  %312 = vmatpush.msra.mxu0 %v148
  %313 = vmatpush.msra.mxu0 %v146
  %314 = vmatpush.msra.mxu0 %v144
  %315 = vmatpush.msra.mxu0 %v142
  %316 = vmatpush.msra.mxu0 %v140
  %317 = vmatpush.msra.mxu0 %v138
  %318 = vmatpush.msra.mxu0 %v136
  %319 = vmatpush.msra.mxu0 %v134
  %320 = vmatpush.msra.mxu0 %v132
  %321 = vmatpush.msra.mxu0 %v130
  %322 = vmatmul.f32.gmra.mxu0 %v16
  %v323 = vpop.f32.mrf.mxu0
  %v324 = vadd.f32 %v268, %v323
  %325 = vmatmul.f32.gmra.mxu0 %v20
  %v326 = vpop.f32.mrf.mxu0
  %v327 = vadd.f32 %v271, %v326
  %328 = vmatmul.f32.gmra.mxu0 %v24
  %v329 = vpop.f32.mrf.mxu0
  %v330 = vadd.f32 %v274, %v329
  %331 = vmatmul.f32.gmra.mxu0 %v28
  %v332 = vpop.f32.mrf.mxu0
  %v333 = vadd.f32 %v277, %v332
  %334 = vmatmul.f32.gmra.mxu0 %v32
  %v335 = vpop.f32.mrf.mxu0
  %v336 = vadd.f32 %v280, %v335
  %337 = vmatmul.f32.gmra.mxu0 %v36
  %v338 = vpop.f32.mrf.mxu0
  %v339 = vadd.f32 %v283, %v338
  %340 = vmatmul.f32.gmra.mxu0 %v40
  %v341 = vpop.f32.mrf.mxu0
  %v342 = vadd.f32 %v286, %v341
  %343 = vmatmul.f32.gmra.mxu0 %v44
  %v344 = vpop.f32.mrf.mxu0
  %v345 = vadd.f32 %v289, %v344
  %346 = vmatmul.f32.gmra.mxu0 %v48
  %v347 = vpop.f32.mrf.mxu0
  %v348 = vadd.f32 %v292, %v347
  %349 = vmatmul.f32.gmra.mxu0 %v52
  %v350 = vpop.f32.mrf.mxu0
  %v351 = vadd.f32 %v295, %v350
  %352 = vmatmul.f32.gmra.mxu0 %v56
  %v353 = vpop.f32.mrf.mxu0
  %v354 = vadd.f32 %v298, %v353
  %355 = vmatmul.f32.gmra.mxu0 %v60
  %v356 = vpop.f32.mrf.mxu0
  %v357 = vadd.f32 %v301, %v356
  %358 = vmatmul.f32.gmra.mxu0 %v64
  %v359 = vpop.f32.mrf.mxu0
  %v360 = vadd.f32 %v304, %v359
  %361 = vdwg.mxu0
  %362 = vmatpush.msra.mxu0 %v192
  %363 = vmatpush.msra.mxu0 %v190
  %364 = vmatpush.msra.mxu0 %v188
  %365 = vmatpush.msra.mxu0 %v186
  %366 = vmatpush.msra.mxu0 %v184
  %367 = vmatpush.msra.mxu0 %v182
  %368 = vmatpush.msra.mxu0 %v180
  %369 = vmatpush.msra.mxu0 %v178
  %370 = vmatpush.msra.mxu0 %v176
  %371 = vmatpush.msra.mxu0 %v174
  %372 = vmatpush.msra.mxu0 %v172
  %373 = vmatpush.msra.mxu0 %v170
  %374 = vmatpush.msra.mxu0 %v168
  %375 = vmatpush.msra.mxu0 %v166
  %376 = vmatpush.msra.mxu0 %v164
  %377 = vmatpush.msra.mxu0 %v162
  %378 = vmatmul.f32.gmra.mxu0 %v17
  %v379 = vpop.f32.mrf.mxu0
  %v380 = vadd.f32 %v324, %v379
  %381 = vmatmul.f32.gmra.mxu0 %v21
  %v382 = vpop.f32.mrf.mxu0
  %v383 = vadd.f32 %v327, %v382
  %384 = vmatmul.f32.gmra.mxu0 %v25
  %v385 = vpop.f32.mrf.mxu0
  %v386 = vadd.f32 %v330, %v385
  %387 = vmatmul.f32.gmra.mxu0 %v29
  %v388 = vpop.f32.mrf.mxu0
  %v389 = vadd.f32 %v333, %v388
  %390 = vmatmul.f32.gmra.mxu0 %v33
  %v391 = vpop.f32.mrf.mxu0
  %v392 = vadd.f32 %v336, %v391
  %393 = vmatmul.f32.gmra.mxu0 %v37
  %v394 = vpop.f32.mrf.mxu0
  %v395 = vadd.f32 %v339, %v394
  %396 = vmatmul.f32.gmra.mxu0 %v41
  %v397 = vpop.f32.mrf.mxu0
  %v398 = vadd.f32 %v342, %v397
  %399 = vmatmul.f32.gmra.mxu0 %v45
  %v400 = vpop.f32.mrf.mxu0
  %v401 = vadd.f32 %v345, %v400
  %402 = vmatmul.f32.gmra.mxu0 %v49
  %v403 = vpop.f32.mrf.mxu0
  %v404 = vadd.f32 %v348, %v403
  %405 = vmatmul.f32.gmra.mxu0 %v53
  %v406 = vpop.f32.mrf.mxu0
  %v407 = vadd.f32 %v351, %v406
  %408 = vmatmul.f32.gmra.mxu0 %v57
  %v409 = vpop.f32.mrf.mxu0
  %v410 = vadd.f32 %v354, %v409
  %411 = vmatmul.f32.gmra.mxu0 %v61
  %v412 = vpop.f32.mrf.mxu0
  %v413 = vadd.f32 %v357, %v412
  %414 = vmatmul.f32.gmra.mxu0 %v65
  %v415 = vpop.f32.mrf.mxu0
  %v416 = vadd.f32 %v360, %v415
  %417 = vdwg.mxu0
  %418 = vmatpush.msra.mxu0 %v97
  %419 = vmatpush.msra.mxu0 %v95
  %420 = vmatpush.msra.mxu0 %v93
  %421 = vmatpush.msra.mxu0 %v91
  %422 = vmatpush.msra.mxu0 %v89
  %423 = vmatpush.msra.mxu0 %v87
  %424 = vmatpush.msra.mxu0 %v85
  %425 = vmatpush.msra.mxu0 %v83
  %426 = vmatpush.msra.mxu0 %v81
  %427 = vmatpush.msra.mxu0 %v79
  %428 = vmatpush.msra.mxu0 %v77
  %429 = vmatpush.msra.mxu0 %v75
  %430 = vmatpush.msra.mxu0 %v73
  %431 = vmatpush.msra.mxu0 %v71
  %432 = vmatpush.msra.mxu0 %v69
  %433 = vmatpush.msra.mxu0 %v67
  %434 = vmatmul.f32.gmra.mxu0 %v14
  %v435 = vpop.f32.mrf.mxu0
  %v436 = vadd.f32 0.0, %v435
  %437 = vmatmul.f32.gmra.mxu0 %v18
  %v438 = vpop.f32.mrf.mxu0
  %v439 = vadd.f32 0.0, %v438
  %440 = vmatmul.f32.gmra.mxu0 %v22
  %v441 = vpop.f32.mrf.mxu0
  %v442 = vadd.f32 0.0, %v441
  %443 = vmatmul.f32.gmra.mxu0 %v26
  %v444 = vpop.f32.mrf.mxu0
  %v445 = vadd.f32 0.0, %v444
  %446 = vmatmul.f32.gmra.mxu0 %v30
  %v447 = vpop.f32.mrf.mxu0
  %v448 = vadd.f32 0.0, %v447
  %449 = vmatmul.f32.gmra.mxu0 %v34
  %v450 = vpop.f32.mrf.mxu0
  %v451 = vadd.f32 0.0, %v450
  %452 = vmatmul.f32.gmra.mxu0 %v38
  %v453 = vpop.f32.mrf.mxu0
  %v454 = vadd.f32 0.0, %v453
  %455 = vmatmul.f32.gmra.mxu0 %v42
  %v456 = vpop.f32.mrf.mxu0
  %v457 = vadd.f32 0.0, %v456
  %458 = vmatmul.f32.gmra.mxu0 %v46
  %v459 = vpop.f32.mrf.mxu0
  %v460 = vadd.f32 0.0, %v459
  %461 = vmatmul.f32.gmra.mxu0 %v50
  %v462 = vpop.f32.mrf.mxu0
  %v463 = vadd.f32 0.0, %v462
  %464 = vmatmul.f32.gmra.mxu0 %v54
  %v465 = vpop.f32.mrf.mxu0
  %v466 = vadd.f32 0.0, %v465
  %467 = vmatmul.f32.gmra.mxu0 %v58
  %v468 = vpop.f32.mrf.mxu0
  %v469 = vadd.f32 0.0, %v468
  %470 = vmatmul.f32.gmra.mxu0 %v62
  %v471 = vpop.f32.mrf.mxu0
  %v472 = vadd.f32 0.0, %v471
  %473 = vdwg.mxu0
  %474 = vmatpush.msra.mxu0 %v129
  %475 = vmatpush.msra.mxu0 %v127
  %476 = vmatpush.msra.mxu0 %v125
  %477 = vmatpush.msra.mxu0 %v123
  %478 = vmatpush.msra.mxu0 %v121
  %479 = vmatpush.msra.mxu0 %v119
  %480 = vmatpush.msra.mxu0 %v117
  %481 = vmatpush.msra.mxu0 %v115
  %482 = vmatpush.msra.mxu0 %v113
  %483 = vmatpush.msra.mxu0 %v111
  %484 = vmatpush.msra.mxu0 %v109
  %485 = vmatpush.msra.mxu0 %v107
  %486 = vmatpush.msra.mxu0 %v105
  %487 = vmatpush.msra.mxu0 %v103
  %488 = vmatpush.msra.mxu0 %v101
  %489 = vmatpush.msra.mxu0 %v99
  %490 = vmatmul.f32.gmra.mxu0 %v15
  %v491 = vpop.f32.mrf.mxu0
  %v492 = vadd.f32 %v436, %v491
  %493 = vmatmul.f32.gmra.mxu0 %v19
  %v494 = vpop.f32.mrf.mxu0
  %v495 = vadd.f32 %v439, %v494
  %496 = vmatmul.f32.gmra.mxu0 %v23
  %v497 = vpop.f32.mrf.mxu0
  %v498 = vadd.f32 %v442, %v497
  %499 = vmatmul.f32.gmra.mxu0 %v27
  %v500 = vpop.f32.mrf.mxu0
  %v501 = vadd.f32 %v445, %v500
  %502 = vmatmul.f32.gmra.mxu0 %v31
  %v503 = vpop.f32.mrf.mxu0
  %v504 = vadd.f32 %v448, %v503
  %505 = vmatmul.f32.gmra.mxu0 %v35
  %v506 = vpop.f32.mrf.mxu0
  %v507 = vadd.f32 %v451, %v506
  %508 = vmatmul.f32.gmra.mxu0 %v39
  %v509 = vpop.f32.mrf.mxu0
  %v510 = vadd.f32 %v454, %v509
  %511 = vmatmul.f32.gmra.mxu0 %v43
  %v512 = vpop.f32.mrf.mxu0
  %v513 = vadd.f32 %v457, %v512
  %514 = vmatmul.f32.gmra.mxu0 %v47
  %v515 = vpop.f32.mrf.mxu0
  %v516 = vadd.f32 %v460, %v515
  %517 = vmatmul.f32.gmra.mxu0 %v51
  %v518 = vpop.f32.mrf.mxu0
  %v519 = vadd.f32 %v463, %v518
  %520 = vmatmul.f32.gmra.mxu0 %v55
  %v521 = vpop.f32.mrf.mxu0
  %v522 = vadd.f32 %v466, %v521
  %523 = vmatmul.f32.gmra.mxu0 %v59
  %v524 = vpop.f32.mrf.mxu0
  %v525 = vadd.f32 %v469, %v524
  %526 = vmatmul.f32.gmra.mxu0 %v63
  %v527 = vpop.f32.mrf.mxu0
  %v528 = vadd.f32 %v472, %v527
  %529 = vdwg.mxu0
  %530 = vmatpush.msra.mxu0 %v161
  %531 = vmatpush.msra.mxu0 %v159
  %532 = vmatpush.msra.mxu0 %v157
  %533 = vmatpush.msra.mxu0 %v155
  %534 = vmatpush.msra.mxu0 %v153
  %535 = vmatpush.msra.mxu0 %v151
  %536 = vmatpush.msra.mxu0 %v149
  %537 = vmatpush.msra.mxu0 %v147
  %538 = vmatpush.msra.mxu0 %v145
  %539 = vmatpush.msra.mxu0 %v143
  %540 = vmatpush.msra.mxu0 %v141
  %541 = vmatpush.msra.mxu0 %v139
  %542 = vmatpush.msra.mxu0 %v137
  %543 = vmatpush.msra.mxu0 %v135
  %544 = vmatpush.msra.mxu0 %v133
  %545 = vmatpush.msra.mxu0 %v131
  %546 = vmatmul.f32.gmra.mxu0 %v16
  %v547 = vpop.f32.mrf.mxu0
  %v548 = vadd.f32 %v492, %v547
  %549 = vmatmul.f32.gmra.mxu0 %v20
  %v550 = vpop.f32.mrf.mxu0
  %v551 = vadd.f32 %v495, %v550
  %552 = vmatmul.f32.gmra.mxu0 %v24
  %v553 = vpop.f32.mrf.mxu0
  %v554 = vadd.f32 %v498, %v553
  %555 = vmatmul.f32.gmra.mxu0 %v28
  %v556 = vpop.f32.mrf.mxu0
  %v557 = vadd.f32 %v501, %v556
  %558 = vmatmul.f32.gmra.mxu0 %v32
  %v559 = vpop.f32.mrf.mxu0
  %v560 = vadd.f32 %v504, %v559
  %561 = vmatmul.f32.gmra.mxu0 %v36
  %v562 = vpop.f32.mrf.mxu0
  %v563 = vadd.f32 %v507, %v562
  %564 = vmatmul.f32.gmra.mxu0 %v40
  %v565 = vpop.f32.mrf.mxu0
  %v566 = vadd.f32 %v510, %v565
  %567 = vmatmul.f32.gmra.mxu0 %v44
  %v568 = vpop.f32.mrf.mxu0
  %v569 = vadd.f32 %v513, %v568
  %570 = vmatmul.f32.gmra.mxu0 %v48
  %v571 = vpop.f32.mrf.mxu0
  %v572 = vadd.f32 %v516, %v571
  %573 = vmatmul.f32.gmra.mxu0 %v52
  %v574 = vpop.f32.mrf.mxu0
  %v575 = vadd.f32 %v519, %v574
  %576 = vmatmul.f32.gmra.mxu0 %v56
  %v577 = vpop.f32.mrf.mxu0
  %v578 = vadd.f32 %v522, %v577
  %579 = vmatmul.f32.gmra.mxu0 %v60
  %v580 = vpop.f32.mrf.mxu0
  %v581 = vadd.f32 %v525, %v580
  %582 = vmatmul.f32.gmra.mxu0 %v64
  %v583 = vpop.f32.mrf.mxu0
  %v584 = vadd.f32 %v528, %v583
  %585 = vdwg.mxu0
  %586 = vmatpush.msra.mxu0 %v193
  %587 = vmatpush.msra.mxu0 %v191
  %588 = vmatpush.msra.mxu0 %v189
  %589 = vmatpush.msra.mxu0 %v187
  %590 = vmatpush.msra.mxu0 %v185
  %591 = vmatpush.msra.mxu0 %v183
  %592 = vmatpush.msra.mxu0 %v181
  %593 = vmatpush.msra.mxu0 %v179
  %594 = vmatpush.msra.mxu0 %v177
  %595 = vmatpush.msra.mxu0 %v175
  %596 = vmatpush.msra.mxu0 %v173
  %597 = vmatpush.msra.mxu0 %v171
  %598 = vmatpush.msra.mxu0 %v169
  %599 = vmatpush.msra.mxu0 %v167
  %600 = vmatpush.msra.mxu0 %v165
  %601 = vmatpush.msra.mxu0 %v163
  %602 = vmatmul.f32.gmra.mxu0 %v17
  %v603 = vpop.f32.mrf.mxu0
  %v604 = vadd.f32 %v548, %v603
  %605 = vmatmul.f32.gmra.mxu0 %v21
  %v606 = vpop.f32.mrf.mxu0
  %v607 = vadd.f32 %v551, %v606
  %608 = vmatmul.f32.gmra.mxu0 %v25
  %v609 = vpop.f32.mrf.mxu0
  %v610 = vadd.f32 %v554, %v609
  %611 = vmatmul.f32.gmra.mxu0 %v29
  %v612 = vpop.f32.mrf.mxu0
  %v613 = vadd.f32 %v557, %v612
  %614 = vmatmul.f32.gmra.mxu0 %v33
  %v615 = vpop.f32.mrf.mxu0
  %v616 = vadd.f32 %v560, %v615
  %617 = vmatmul.f32.gmra.mxu0 %v37
  %v618 = vpop.f32.mrf.mxu0
  %v619 = vadd.f32 %v563, %v618
  %620 = vmatmul.f32.gmra.mxu0 %v41
  %v621 = vpop.f32.mrf.mxu0
  %v622 = vadd.f32 %v566, %v621
  %623 = vmatmul.f32.gmra.mxu0 %v45
  %v624 = vpop.f32.mrf.mxu0
  %v625 = vadd.f32 %v569, %v624
  %626 = vmatmul.f32.gmra.mxu0 %v49
  %v627 = vpop.f32.mrf.mxu0
  %v628 = vadd.f32 %v572, %v627
  %629 = vmatmul.f32.gmra.mxu0 %v53
  %v630 = vpop.f32.mrf.mxu0
  %v631 = vadd.f32 %v575, %v630
  %632 = vmatmul.f32.gmra.mxu0 %v57
  %v633 = vpop.f32.mrf.mxu0
  %v634 = vadd.f32 %v578, %v633
  %635 = vmatmul.f32.gmra.mxu0 %v61
  %v636 = vpop.f32.mrf.mxu0
  %v637 = vadd.f32 %v581, %v636
  %638 = vmatmul.f32.gmra.mxu0 %v65
  %v639 = vpop.f32.mrf.mxu0
  %v640 = vadd.f32 %v584, %v639
  %641 = vdwg.mxu0
  %655 = vrot.lane.b32.xlu0 %v380, 64
  %v656 = vpop.permute.xlu0 %655
  %657 = vrot.lane.b32.xlu0 %v383, 64
  %v658 = vpop.permute.xlu0 %657
  %659 = vrot.lane.b32.xlu0 %v386, 64
  %v660 = vpop.permute.xlu0 %659
  %661 = vrot.lane.b32.xlu0 %v389, 64
  %v662 = vpop.permute.xlu0 %661
  %663 = vrot.lane.b32.xlu0 %v392, 64
  %v664 = vpop.permute.xlu0 %663
  %665 = vrot.lane.b32.xlu0 %v395, 64
  %v666 = vpop.permute.xlu0 %665
  %667 = vrot.lane.b32.xlu0 %v398, 64
  %v668 = vpop.permute.xlu0 %667
  %669 = vrot.lane.b32.xlu0 %v401, 64
  %v670 = vpop.permute.xlu0 %669
  %671 = vrot.lane.b32.xlu0 %v404, 64
  %v672 = vpop.permute.xlu0 %671
  %673 = vrot.lane.b32.xlu0 %v407, 64
  %v674 = vpop.permute.xlu0 %673
  %675 = vrot.lane.b32.xlu0 %v410, 64
  %v676 = vpop.permute.xlu0 %675
  %677 = vrot.lane.b32.xlu0 %v413, 64
  %v678 = vpop.permute.xlu0 %677
  %679 = vrot.lane.b32.xlu0 %v416, 64
  %v680 = vpop.permute.xlu0 %679
  %v694 = vmax.f32 %v380, %v656
  %v695 = vmax.f32 %v383, %v658
  %v696 = vmax.f32 %v386, %v660
  %v697 = vmax.f32 %v389, %v662
  %v698 = vmax.f32 %v392, %v664
  %v699 = vmax.f32 %v395, %v666
  %v700 = vmax.f32 %v398, %v668
  %v701 = vmax.f32 %v401, %v670
  %v702 = vmax.f32 %v404, %v672
  %v703 = vmax.f32 %v407, %v674
  %v704 = vmax.f32 %v410, %v676
  %v705 = vmax.f32 %v413, %v678
  %v706 = vmax.f32 %v416, %v680
  %720 = vrot.lane.b32.xlu0 %v604, 64
  %v721 = vpop.permute.xlu0 %720
  %722 = vrot.lane.b32.xlu0 %v607, 64
  %v723 = vpop.permute.xlu0 %722
  %724 = vrot.lane.b32.xlu0 %v610, 64
  %v725 = vpop.permute.xlu0 %724
  %726 = vrot.lane.b32.xlu0 %v613, 64
  %v727 = vpop.permute.xlu0 %726
  %728 = vrot.lane.b32.xlu0 %v616, 64
  %v729 = vpop.permute.xlu0 %728
  %730 = vrot.lane.b32.xlu0 %v619, 64
  %v731 = vpop.permute.xlu0 %730
  %732 = vrot.lane.b32.xlu0 %v622, 64
  %v733 = vpop.permute.xlu0 %732
  %734 = vrot.lane.b32.xlu0 %v625, 64
  %v735 = vpop.permute.xlu0 %734
  %736 = vrot.lane.b32.xlu0 %v628, 64
  %v737 = vpop.permute.xlu0 %736
  %738 = vrot.lane.b32.xlu0 %v631, 64
  %v739 = vpop.permute.xlu0 %738
  %740 = vrot.lane.b32.xlu0 %v634, 64
  %v741 = vpop.permute.xlu0 %740
  %742 = vrot.lane.b32.xlu0 %v637, 64
  %v743 = vpop.permute.xlu0 %742
  %744 = vrot.lane.b32.xlu0 %v640, 64
  %v745 = vpop.permute.xlu0 %744
  %v759 = vmax.f32 %v604, %v721
  %v760 = vmax.f32 %v607, %v723
  %v761 = vmax.f32 %v610, %v725
  %v762 = vmax.f32 %v613, %v727
  %v763 = vmax.f32 %v616, %v729
  %v764 = vmax.f32 %v619, %v731
  %v765 = vmax.f32 %v622, %v733
  %v766 = vmax.f32 %v625, %v735
  %v767 = vmax.f32 %v628, %v737
  %v768 = vmax.f32 %v631, %v739
  %v769 = vmax.f32 %v634, %v741
  %v770 = vmax.f32 %v637, %v743
  %v771 = vmax.f32 %v640, %v745
  %v772 = vmax.f32 %v694, %v759
  %v773 = vmax.f32 %v695, %v760
  %v774 = vmax.f32 %v696, %v761
  %v775 = vmax.f32 %v697, %v762
  %v776 = vmax.f32 %v698, %v763
  %v777 = vmax.f32 %v699, %v764
  %v778 = vmax.f32 %v700, %v765
  %v779 = vmax.f32 %v701, %v766
  %v780 = vmax.f32 %v702, %v767
  %v781 = vmax.f32 %v703, %v768
  %v782 = vmax.f32 %v704, %v769
  %v783 = vmax.f32 %v705, %v770
  %v784 = vmax.f32 %v706, %v771
  %v785 = vld [vmem:[%s2] sm:$0x1]
  %v787 = vperm.slane %v785, 0
  %v789 = vadd.f32 %v772, %v787
  %v790 = vadd.f32 %v773, %v787
  %v791 = vadd.f32 %v774, %v787
  %v792 = vadd.f32 %v775, %v787
  %v793 = vadd.f32 %v776, %v787
  %v794 = vadd.f32 %v777, %v787
  %v795 = vadd.f32 %v778, %v787
  %v796 = vadd.f32 %v779, %v787
  %v797 = vadd.f32 %v780, %v787
  %v798 = vadd.f32 %v781, %v787
  %v799 = vadd.f32 %v782, %v787
  %v800 = vadd.f32 %v783, %v787
  %v801 = vadd.f32 %v784, %v787
  %v802 = vmax.f32 %v789, 0.0
  %v803 = vmax.f32 %v790, 0.0
  %v804 = vmax.f32 %v791, 0.0
  %v805 = vmax.f32 %v792, 0.0
  %v806 = vmax.f32 %v793, 0.0
  %v807 = vmax.f32 %v794, 0.0
  %v808 = vmax.f32 %v795, 0.0
  %v809 = vmax.f32 %v796, 0.0
  %v810 = vmax.f32 %v797, 0.0
  %v811 = vmax.f32 %v798, 0.0
  %v812 = vmax.f32 %v799, 0.0
  %v813 = vmax.f32 %v800, 0.0
  %v814 = vmax.f32 %v801, 0.0
  %vm815 = vcmask 523264
  %816 = vst.msk [vmem:[%s3] sm:$0xff] %vm815, %v802
  %817 = vst.msk [vmem:[%s3 + $0x8] sm:$0xff] %vm815, %v803
  %818 = vst.msk [vmem:[%s3 + $0x10] sm:$0xff] %vm815, %v804
  %819 = vst.msk [vmem:[%s3 + $0x18] sm:$0xff] %vm815, %v805
  %820 = vst.msk [vmem:[%s3 + $0x20] sm:$0xff] %vm815, %v806
  %821 = vst.msk [vmem:[%s3 + $0x28] sm:$0xff] %vm815, %v807
  %822 = vst.msk [vmem:[%s3 + $0x30] sm:$0xff] %vm815, %v808
  %823 = vst.msk [vmem:[%s3 + $0x38] sm:$0xff] %vm815, %v809
  %824 = vst.msk [vmem:[%s3 + $0x40] sm:$0xff] %vm815, %v810
  %825 = vst.msk [vmem:[%s3 + $0x48] sm:$0xff] %vm815, %v811
  %826 = vst.msk [vmem:[%s3 + $0x50] sm:$0xff] %vm815, %v812
  %827 = vst.msk [vmem:[%s3 + $0x58] sm:$0xff] %vm815, %v813
  %vm828 = vcmask 517120
  %829 = vst.msk [vmem:[%s3 + $0x60] sm:$0x3] %vm828, %v814
  // Predicated region
  $region14: #{digit_classifier_forward.4} parent=0 // pred_check
    _
  $region15: #{digit_classifier_forward.4} parent=0 // pred_check_branch
    %831 = sbr.rel (0) target = $region17
  $region16: #{digit_classifier_forward.4} parent=0 // pred_region
    _
  $region17: #{digit_classifier_forward.4} parent=0 // pred_fallthru
    _
  // Predicated region
  $region18: #{digit_classifier_forward.4} parent=0 // pred_check
    _
  $region19: #{digit_classifier_forward.4} parent=0 // pred_check_branch
    %833 = sbr.rel (0) target = $region21
  $region20: #{digit_classifier_forward.4} parent=0 // pred_region
    _
  $region21: #{digit_classifier_forward.4} parent=0 // pred_fallthru
    _

// kernel: digit_classifier_forward.5
$region0: #{digit_classifier_forward.5}
  #allocation0 [shape = 'u32[]', space=smem, size = 0x4, offset = 0x4, fixed_abs, tag = 'smem constant byte address 0x4 - core index']
  #allocation1 [shape = 'u32[72,128]{1,0:T(1,128)}', space=vmem, size = 0x9000, scoped, tag = 'internal scratch']
  %s0 = inlined_call_operand.vmem [shape: f32[2,3136], index: 0, kind: input, shape index: {}]
  %s1 = inlined_call_operand.vmem [shape: f32[3136,128], index: 1, kind: input, shape index: {}]
  %s2 = inlined_call_operand.vmem [shape: f32[1,128], index: 2, kind: input, shape index: {}]
  %s3 = inlined_call_operand.hbm [shape: f32[2,128], index: 3, kind: output, shape index: {}]
  %s4 = sld [smem:[#allocation0]]
  $region22: #{digit_classifier_forward.5} parent=0
    _
  %s6 = ssub.s32 1, %s4
  %s7 = scalar_select 0, %s6, %s4
  $region1: #{digit_classifier_forward.5} parent=0
    #allocation2 [shape = 'u8[1024]{0}', space=vmem, size = 0x400, scoped, tag = 'output window, operand 0, single buffered']
    #allocation3 [shape = 's32[1]{0}', space=sflag, size = 0x4, scoped, tag = 'scoped memory for digit_classifier_forward.5']
    %8 = vsyncpa [#allocation3], 0
    // Predicated region
    $region2: #{digit_classifier_forward.5} parent=1 // pred_check
      _
    $region3: #{digit_classifier_forward.5} parent=1 // pred_check_branch
      %10 = sbr.rel (0) target = $region5
    $region4: #{digit_classifier_forward.5} parent=1 // pred_region
      _
    $region5: #{digit_classifier_forward.5} parent=1 // pred_fallthru
      _
    // Predicated region
    $region6: #{digit_classifier_forward.5} parent=1 // pred_check
      _
    $region7: #{digit_classifier_forward.5} parent=1 // pred_check_branch
      %12 = sbr.rel (0) target = $region9
    $region8: #{digit_classifier_forward.5} parent=1 // pred_region
      _
    $region9: #{digit_classifier_forward.5} parent=1 // pred_fallthru
      _
    // Predicated region
    $region10: #{digit_classifier_forward.5} parent=1 // pred_check
      _
    $region11: #{digit_classifier_forward.5} parent=1 // pred_check_branch
      %14 = sbr.rel (0) target = $region13
    $region12: #{digit_classifier_forward.5} parent=1 // pred_region
      _
    $region13: #{digit_classifier_forward.5} parent=1 // pred_fallthru
      _
    %v15 = vld [vmem:[%s0] sm:$0xff]
    %v16 = vld [vmem:[%s0 + $0x8] sm:$0xff]
    %v17 = vld [vmem:[%s0 + $0x10] sm:$0xff]
    %v18 = vld [vmem:[%s0 + $0x18] sm:$0xff]
    %v19 = vld [vmem:[%s0 + $0x20] sm:$0xff]
    %v20 = vld [vmem:[%s0 + $0x28] sm:$0xff]
    %v21 = vld [vmem:[%s0 + $0x30] sm:$0x3]
    %v22 = vld [vmem:[%s1] sm:$0xff]
    %v23 = vld [vmem:[%s1 + $0x8] sm:$0xff]
    %v24 = vld [vmem:[%s1 + $0x10] sm:$0xff]
    %v25 = vld [vmem:[%s1 + $0x18] sm:$0xff]
    %v26 = vld [vmem:[%s1 + $0x20] sm:$0xff]
    %v27 = vld [vmem:[%s1 + $0x28] sm:$0xff]
    %v28 = vld [vmem:[%s1 + $0x30] sm:$0xff]
    %v29 = vld [vmem:[%s1 + $0x38] sm:$0xff]
    %v30 = vld [vmem:[%s1 + $0x40] sm:$0xff]
    %v31 = vld [vmem:[%s1 + $0x48] sm:$0xff]
    %v32 = vld [vmem:[%s1 + $0x50] sm:$0xff]
    %v33 = vld [vmem:[%s1 + $0x58] sm:$0xff]
    %v34 = vld [vmem:[%s1 + $0x60] sm:$0xff]
    %v35 = vld [vmem:[%s1 + $0x68] sm:$0xff]
    %v36 = vld [vmem:[%s1 + $0x70] sm:$0xff]
    %v37 = vld [vmem:[%s1 + $0x78] sm:$0xff]
    %v38 = vld [vmem:[%s1 + $0x80] sm:$0xff]
    %v39 = vld [vmem:[%s1 + $0x88] sm:$0xff]
    %v40 = vld [vmem:[%s1 + $0x90] sm:$0xff]
    %v41 = vld [vmem:[%s1 + $0x98] sm:$0xff]
    %v42 = vld [vmem:[%s1 + $0xa0] sm:$0xff]
    %v43 = vld [vmem:[%s1 + $0xa8] sm:$0xff]
    %v44 = vld [vmem:[%s1 + $0xb0] sm:$0xff]
    %v45 = vld [vmem:[%s1 + $0xb8] sm:$0xff]
    %v46 = vld [vmem:[%s1 + $0xc0] sm:$0xff]
    %v47 = vld [vmem:[%s1 + $0xc8] sm:$0xff]
    %v48 = vld [vmem:[%s1 + $0xd0] sm:$0xff]
    %v49 = vld [vmem:[%s1 + $0xd8] sm:$0xff]
    %v50 = vld [vmem:[%s1 + $0xe0] sm:$0xff]
    %v51 = vld [vmem:[%s1 + $0xe8] sm:$0xff]
    %v52 = vld [vmem:[%s1 + $0xf0] sm:$0xff]
    %v53 = vld [vmem:[%s1 + $0xf8] sm:$0xff]
    %v54 = vld [vmem:[%s1 + $0x100] sm:$0xff]
    %v55 = vld [vmem:[%s1 + $0x108] sm:$0xff]
    %v56 = vld [vmem:[%s1 + $0x110] sm:$0xff]
    %v57 = vld [vmem:[%s1 + $0x118] sm:$0xff]
    %v58 = vld [vmem:[%s1 + $0x120] sm:$0xff]
    %v59 = vld [vmem:[%s1 + $0x128] sm:$0xff]
    %v60 = vld [vmem:[%s1 + $0x130] sm:$0xff]
    %v61 = vld [vmem:[%s1 + $0x138] sm:$0xff]
    %v62 = vld [vmem:[%s1 + $0x140] sm:$0xff]
    %v63 = vld [vmem:[%s1 + $0x148] sm:$0xff]
    %v64 = vld [vmem:[%s1 + $0x150] sm:$0xff]
    %v65 = vld [vmem:[%s1 + $0x158] sm:$0xff]
    %v66 = vld [vmem:[%s1 + $0x160] sm:$0xff]
    %v67 = vld [vmem:[%s1 + $0x168] sm:$0xff]
    %v68 = vld [vmem:[%s1 + $0x170] sm:$0xff]
    %v69 = vld [vmem:[%s1 + $0x178] sm:$0xff]
    %v70 = vld [vmem:[%s1 + $0x180] sm:$0xff]
    %v71 = vld [vmem:[%s1 + $0x188] sm:$0xff]
    %v72 = vld [vmem:[%s1 + $0x190] sm:$0xff]
    %v73 = vld [vmem:[%s1 + $0x198] sm:$0xff]
    %v74 = vld [vmem:[%s1 + $0x1a0] sm:$0xff]
    %v75 = vld [vmem:[%s1 + $0x1a8] sm:$0xff]
    %v76 = vld [vmem:[%s1 + $0x1b0] sm:$0xff]
    %v77 = vld [vmem:[%s1 + $0x1b8] sm:$0xff]
    %v78 = vld [vmem:[%s1 + $0x1c0] sm:$0xff]
    %v79 = vld [vmem:[%s1 + $0x1c8] sm:$0xff]
    %v80 = vld [vmem:[%s1 + $0x1d0] sm:$0xff]
    %v81 = vld [vmem:[%s1 + $0x1d8] sm:$0xff]
    %v82 = vld [vmem:[%s1 + $0x1e0] sm:$0xff]
    %v83 = vld [vmem:[%s1 + $0x1e8] sm:$0xff]
    %v84 = vld [vmem:[%s1 + $0x1f0] sm:$0xff]
    %v85 = vld [vmem:[%s1 + $0x1f8] sm:$0xff]
    %v86 = vld [vmem:[%s1 + $0x200] sm:$0xff]
    %v87 = vld [vmem:[%s1 + $0x208] sm:$0xff]
    %v88 = vld [vmem:[%s1 + $0x210] sm:$0xff]
    %v89 = vld [vmem:[%s1 + $0x218] sm:$0xff]
    %v90 = vld [vmem:[%s1 + $0x220] sm:$0xff]
    %v91 = vld [vmem:[%s1 + $0x228] sm:$0xff]
    %v92 = vld [vmem:[%s1 + $0x230] sm:$0xff]
    %v93 = vld [vmem:[%s1 + $0x238] sm:$0xff]
    %v94 = vld [vmem:[%s1 + $0x240] sm:$0xff]
    %v95 = vld [vmem:[%s1 + $0x248] sm:$0xff]
    %v96 = vld [vmem:[%s1 + $0x250] sm:$0xff]
    %v97 = vld [vmem:[%s1 + $0x258] sm:$0xff]
    %v98 = vld [vmem:[%s1 + $0x260] sm:$0xff]
    %v99 = vld [vmem:[%s1 + $0x268] sm:$0xff]
    %v100 = vld [vmem:[%s1 + $0x270] sm:$0xff]
    %v101 = vld [vmem:[%s1 + $0x278] sm:$0xff]
    %v102 = vld [vmem:[%s1 + $0x280] sm:$0xff]
    %v103 = vld [vmem:[%s1 + $0x288] sm:$0xff]
    %v104 = vld [vmem:[%s1 + $0x290] sm:$0xff]
    %v105 = vld [vmem:[%s1 + $0x298] sm:$0xff]
    %v106 = vld [vmem:[%s1 + $0x2a0] sm:$0xff]
    %v107 = vld [vmem:[%s1 + $0x2a8] sm:$0xff]
    %v108 = vld [vmem:[%s1 + $0x2b0] sm:$0xff]
    %v109 = vld [vmem:[%s1 + $0x2b8] sm:$0xff]
    %v110 = vld [vmem:[%s1 + $0x2c0] sm:$0xff]
    %v111 = vld [vmem:[%s1 + $0x2c8] sm:$0xff]
    %v112 = vld [vmem:[%s1 + $0x2d0] sm:$0xff]
    %v113 = vld [vmem:[%s1 + $0x2d8] sm:$0xff]
    %v114 = vld [vmem:[%s1 + $0x2e0] sm:$0xff]
    %v115 = vld [vmem:[%s1 + $0x2e8] sm:$0xff]
    %v116 = vld [vmem:[%s1 + $0x2f0] sm:$0xff]
    %v117 = vld [vmem:[%s1 + $0x2f8] sm:$0xff]
    %v118 = vld [vmem:[%s1 + $0x300] sm:$0xff]
    %v119 = vld [vmem:[%s1 + $0x308] sm:$0xff]
    %v120 = vld [vmem:[%s1 + $0x310] sm:$0xff]
    %v121 = vld [vmem:[%s1 + $0x318] sm:$0xff]
    %v122 = vld [vmem:[%s1 + $0x320] sm:$0xff]
    %v123 = vld [vmem:[%s1 + $0x328] sm:$0xff]
    %v124 = vld [vmem:[%s1 + $0x330] sm:$0xff]
    %v125 = vld [vmem:[%s1 + $0x338] sm:$0xff]
    %v126 = vld [vmem:[%s1 + $0x340] sm:$0xff]
    %v127 = vld [vmem:[%s1 + $0x348] sm:$0xff]
    %v128 = vld [vmem:[%s1 + $0x350] sm:$0xff]
    %v129 = vld [vmem:[%s1 + $0x358] sm:$0xff]
    %v130 = vld [vmem:[%s1 + $0x360] sm:$0xff]
    %v131 = vld [vmem:[%s1 + $0x368] sm:$0xff]
    %v132 = vld [vmem:[%s1 + $0x370] sm:$0xff]
    %v133 = vld [vmem:[%s1 + $0x378] sm:$0xff]
    %v134 = vld [vmem:[%s1 + $0x380] sm:$0xff]
    %v135 = vld [vmem:[%s1 + $0x388] sm:$0xff]
    %v136 = vld [vmem:[%s1 + $0x390] sm:$0xff]
    %v137 = vld [vmem:[%s1 + $0x398] sm:$0xff]
    %v138 = vld [vmem:[%s1 + $0x3a0] sm:$0xff]
    %v139 = vld [vmem:[%s1 + $0x3a8] sm:$0xff]
    %v140 = vld [vmem:[%s1 + $0x3b0] sm:$0xff]
    %v141 = vld [vmem:[%s1 + $0x3b8] sm:$0xff]
    %v142 = vld [vmem:[%s1 + $0x3c0] sm:$0xff]
    %v143 = vld [vmem:[%s1 + $0x3c8] sm:$0xff]
    %v144 = vld [vmem:[%s1 + $0x3d0] sm:$0xff]
    %v145 = vld [vmem:[%s1 + $0x3d8] sm:$0xff]
    %v146 = vld [vmem:[%s1 + $0x3e0] sm:$0xff]
    %v147 = vld [vmem:[%s1 + $0x3e8] sm:$0xff]
    %v148 = vld [vmem:[%s1 + $0x3f0] sm:$0xff]
    %v149 = vld [vmem:[%s1 + $0x3f8] sm:$0xff]
    %v150 = vld [vmem:[%s1 + $0x400] sm:$0xff]
    %v151 = vld [vmem:[%s1 + $0x408] sm:$0xff]
    %v152 = vld [vmem:[%s1 + $0x410] sm:$0xff]
    %v153 = vld [vmem:[%s1 + $0x418] sm:$0xff]
    %v154 = vld [vmem:[%s1 + $0x420] sm:$0xff]
    %v155 = vld [vmem:[%s1 + $0x428] sm:$0xff]
    %v156 = vld [vmem:[%s1 + $0x430] sm:$0xff]
    %v157 = vld [vmem:[%s1 + $0x438] sm:$0xff]
    %v158 = vld [vmem:[%s1 + $0x440] sm:$0xff]
    %v159 = vld [vmem:[%s1 + $0x448] sm:$0xff]
    %v160 = vld [vmem:[%s1 + $0x450] sm:$0xff]
    %v161 = vld [vmem:[%s1 + $0x458] sm:$0xff]
    %v162 = vld [vmem:[%s1 + $0x460] sm:$0xff]
    %v163 = vld [vmem:[%s1 + $0x468] sm:$0xff]
    %v164 = vld [vmem:[%s1 + $0x470] sm:$0xff]
    %v165 = vld [vmem:[%s1 + $0x478] sm:$0xff]
    %v166 = vld [vmem:[%s1 + $0x480] sm:$0xff]
    %v167 = vld [vmem:[%s1 + $0x488] sm:$0xff]
    %v168 = vld [vmem:[%s1 + $0x490] sm:$0xff]
    %v169 = vld [vmem:[%s1 + $0x498] sm:$0xff]
    %v170 = vld [vmem:[%s1 + $0x4a0] sm:$0xff]
    %v171 = vld [vmem:[%s1 + $0x4a8] sm:$0xff]
    %v172 = vld [vmem:[%s1 + $0x4b0] sm:$0xff]
    %v173 = vld [vmem:[%s1 + $0x4b8] sm:$0xff]
    %v174 = vld [vmem:[%s1 + $0x4c0] sm:$0xff]
    %v175 = vld [vmem:[%s1 + $0x4c8] sm:$0xff]
    %v176 = vld [vmem:[%s1 + $0x4d0] sm:$0xff]
    %v177 = vld [vmem:[%s1 + $0x4d8] sm:$0xff]
    %v178 = vld [vmem:[%s1 + $0x4e0] sm:$0xff]
    %v179 = vld [vmem:[%s1 + $0x4e8] sm:$0xff]
    %v180 = vld [vmem:[%s1 + $0x4f0] sm:$0xff]
    %v181 = vld [vmem:[%s1 + $0x4f8] sm:$0xff]
    %v182 = vld [vmem:[%s1 + $0x500] sm:$0xff]
    %v183 = vld [vmem:[%s1 + $0x508] sm:$0xff]
    %v184 = vld [vmem:[%s1 + $0x510] sm:$0xff]
    %v185 = vld [vmem:[%s1 + $0x518] sm:$0xff]
    %v186 = vld [vmem:[%s1 + $0x520] sm:$0xff]
    %v187 = vld [vmem:[%s1 + $0x528] sm:$0xff]
    %v188 = vld [vmem:[%s1 + $0x530] sm:$0xff]
    %v189 = vld [vmem:[%s1 + $0x538] sm:$0xff]
    %v190 = vld [vmem:[%s1 + $0x540] sm:$0xff]
    %v191 = vld [vmem:[%s1 + $0x548] sm:$0xff]
    %v192 = vld [vmem:[%s1 + $0x550] sm:$0xff]
    %v193 = vld [vmem:[%s1 + $0x558] sm:$0xff]
    %v194 = vld [vmem:[%s1 + $0x560] sm:$0xff]
    %v195 = vld [vmem:[%s1 + $0x568] sm:$0xff]
    %v196 = vld [vmem:[%s1 + $0x570] sm:$0xff]
    %v197 = vld [vmem:[%s1 + $0x578] sm:$0xff]
    %v198 = vld [vmem:[%s1 + $0x580] sm:$0xff]
    %v199 = vld [vmem:[%s1 + $0x588] sm:$0xff]
    %v200 = vld [vmem:[%s1 + $0x590] sm:$0xff]
    %v201 = vld [vmem:[%s1 + $0x598] sm:$0xff]
    %v202 = vld [vmem:[%s1 + $0x5a0] sm:$0xff]
    %v203 = vld [vmem:[%s1 + $0x5a8] sm:$0xff]
    %v204 = vld [vmem:[%s1 + $0x5b0] sm:$0xff]
    %v205 = vld [vmem:[%s1 + $0x5b8] sm:$0xff]
    %v206 = vld [vmem:[%s1 + $0x5c0] sm:$0xff]
    %v207 = vld [vmem:[%s1 + $0x5c8] sm:$0xff]
    %v208 = vld [vmem:[%s1 + $0x5d0] sm:$0xff]
    %v209 = vld [vmem:[%s1 + $0x5d8] sm:$0xff]
    %v210 = vld [vmem:[%s1 + $0x5e0] sm:$0xff]
    %v211 = vld [vmem:[%s1 + $0x5e8] sm:$0xff]
    %v212 = vld [vmem:[%s1 + $0x5f0] sm:$0xff]
    %v213 = vld [vmem:[%s1 + $0x5f8] sm:$0xff]
    %v214 = vld [vmem:[%s1 + $0x600] sm:$0xff]
    %v215 = vld [vmem:[%s1 + $0x608] sm:$0xff]
    %v216 = vld [vmem:[%s1 + $0x610] sm:$0xff]
    %v217 = vld [vmem:[%s1 + $0x618] sm:$0xff]
    %v218 = vld [vmem:[%s1 + $0x620] sm:$0xff]
    %v219 = vld [vmem:[%s1 + $0x628] sm:$0xff]
    %v220 = vld [vmem:[%s1 + $0x630] sm:$0xff]
    %v221 = vld [vmem:[%s1 + $0x638] sm:$0xff]
    %v222 = vld [vmem:[%s1 + $0x640] sm:$0xff]
    %v223 = vld [vmem:[%s1 + $0x648] sm:$0xff]
    %v224 = vld [vmem:[%s1 + $0x650] sm:$0xff]
    %v225 = vld [vmem:[%s1 + $0x658] sm:$0xff]
    %v226 = vld [vmem:[%s1 + $0x660] sm:$0xff]
    %v227 = vld [vmem:[%s1 + $0x668] sm:$0xff]
    %v228 = vld [vmem:[%s1 + $0x670] sm:$0xff]
    %v229 = vld [vmem:[%s1 + $0x678] sm:$0xff]
    %v230 = vld [vmem:[%s1 + $0x680] sm:$0xff]
    %v231 = vld [vmem:[%s1 + $0x688] sm:$0xff]
    %v232 = vld [vmem:[%s1 + $0x690] sm:$0xff]
    %v233 = vld [vmem:[%s1 + $0x698] sm:$0xff]
    %v234 = vld [vmem:[%s1 + $0x6a0] sm:$0xff]
    %v235 = vld [vmem:[%s1 + $0x6a8] sm:$0xff]
    %v236 = vld [vmem:[%s1 + $0x6b0] sm:$0xff]
    %v237 = vld [vmem:[%s1 + $0x6b8] sm:$0xff]
    %v238 = vld [vmem:[%s1 + $0x6c0] sm:$0xff]
    %v239 = vld [vmem:[%s1 + $0x6c8] sm:$0xff]
    %v240 = vld [vmem:[%s1 + $0x6d0] sm:$0xff]
    %v241 = vld [vmem:[%s1 + $0x6d8] sm:$0xff]
    %v242 = vld [vmem:[%s1 + $0x6e0] sm:$0xff]
    %v243 = vld [vmem:[%s1 + $0x6e8] sm:$0xff]
    %v244 = vld [vmem:[%s1 + $0x6f0] sm:$0xff]
    %v245 = vld [vmem:[%s1 + $0x6f8] sm:$0xff]
    %v246 = vld [vmem:[%s1 + $0x700] sm:$0xff]
    %v247 = vld [vmem:[%s1 + $0x708] sm:$0xff]
    %v248 = vld [vmem:[%s1 + $0x710] sm:$0xff]
    %v249 = vld [vmem:[%s1 + $0x718] sm:$0xff]
    %v250 = vld [vmem:[%s1 + $0x720] sm:$0xff]
    %v251 = vld [vmem:[%s1 + $0x728] sm:$0xff]
    %v252 = vld [vmem:[%s1 + $0x730] sm:$0xff]
    %v253 = vld [vmem:[%s1 + $0x738] sm:$0xff]
    %v254 = vld [vmem:[%s1 + $0x740] sm:$0xff]
    %v255 = vld [vmem:[%s1 + $0x748] sm:$0xff]
    %v256 = vld [vmem:[%s1 + $0x750] sm:$0xff]
    %v257 = vld [vmem:[%s1 + $0x758] sm:$0xff]
    %v258 = vld [vmem:[%s1 + $0x760] sm:$0xff]
    %v259 = vld [vmem:[%s1 + $0x768] sm:$0xff]
    %v260 = vld [vmem:[%s1 + $0x770] sm:$0xff]
    %v261 = vld [vmem:[%s1 + $0x778] sm:$0xff]
    %v262 = vld [vmem:[%s1 + $0x780] sm:$0xff]
    %v263 = vld [vmem:[%s1 + $0x788] sm:$0xff]
    %v264 = vld [vmem:[%s1 + $0x790] sm:$0xff]
    %v265 = vld [vmem:[%s1 + $0x798] sm:$0xff]
    %v266 = vld [vmem:[%s1 + $0x7a0] sm:$0xff]
    %v267 = vld [vmem:[%s1 + $0x7a8] sm:$0xff]
    %v268 = vld [vmem:[%s1 + $0x7b0] sm:$0xff]
    %v269 = vld [vmem:[%s1 + $0x7b8] sm:$0xff]
    %v270 = vld [vmem:[%s1 + $0x7c0] sm:$0xff]
    %v271 = vld [vmem:[%s1 + $0x7c8] sm:$0xff]
    %v272 = vld [vmem:[%s1 + $0x7d0] sm:$0xff]
    %v273 = vld [vmem:[%s1 + $0x7d8] sm:$0xff]
    %v274 = vld [vmem:[%s1 + $0x7e0] sm:$0xff]
    %v275 = vld [vmem:[%s1 + $0x7e8] sm:$0xff]
    %v276 = vld [vmem:[%s1 + $0x7f0] sm:$0xff]
    %v277 = vld [vmem:[%s1 + $0x7f8] sm:$0xff]
    %v278 = vld [vmem:[%s1 + $0x800] sm:$0xff]
    %v279 = vld [vmem:[%s1 + $0x808] sm:$0xff]
    %v280 = vld [vmem:[%s1 + $0x810] sm:$0xff]
    %v281 = vld [vmem:[%s1 + $0x818] sm:$0xff]
    %v282 = vld [vmem:[%s1 + $0x820] sm:$0xff]
    %v283 = vld [vmem:[%s1 + $0x828] sm:$0xff]
    %v284 = vld [vmem:[%s1 + $0x830] sm:$0xff]
    %v285 = vld [vmem:[%s1 + $0x838] sm:$0xff]
    %v286 = vld [vmem:[%s1 + $0x840] sm:$0xff]
    %v287 = vld [vmem:[%s1 + $0x848] sm:$0xff]
    %v288 = vld [vmem:[%s1 + $0x850] sm:$0xff]
    %v289 = vld [vmem:[%s1 + $0x858] sm:$0xff]
    %v290 = vld [vmem:[%s1 + $0x860] sm:$0xff]
    %v291 = vld [vmem:[%s1 + $0x868] sm:$0xff]
    %v292 = vld [vmem:[%s1 + $0x870] sm:$0xff]
    %v293 = vld [vmem:[%s1 + $0x878] sm:$0xff]
    %v294 = vld [vmem:[%s1 + $0x880] sm:$0xff]
    %v295 = vld [vmem:[%s1 + $0x888] sm:$0xff]
    %v296 = vld [vmem:[%s1 + $0x890] sm:$0xff]
    %v297 = vld [vmem:[%s1 + $0x898] sm:$0xff]
    %v298 = vld [vmem:[%s1 + $0x8a0] sm:$0xff]
    %v299 = vld [vmem:[%s1 + $0x8a8] sm:$0xff]
    %v300 = vld [vmem:[%s1 + $0x8b0] sm:$0xff]
    %v301 = vld [vmem:[%s1 + $0x8b8] sm:$0xff]
    %v302 = vld [vmem:[%s1 + $0x8c0] sm:$0xff]
    %v303 = vld [vmem:[%s1 + $0x8c8] sm:$0xff]
    %v304 = vld [vmem:[%s1 + $0x8d0] sm:$0xff]
    %v305 = vld [vmem:[%s1 + $0x8d8] sm:$0xff]
    %v306 = vld [vmem:[%s1 + $0x8e0] sm:$0xff]
    %v307 = vld [vmem:[%s1 + $0x8e8] sm:$0xff]
    %v308 = vld [vmem:[%s1 + $0x8f0] sm:$0xff]
    %v309 = vld [vmem:[%s1 + $0x8f8] sm:$0xff]
    %v310 = vld [vmem:[%s1 + $0x900] sm:$0xff]
    %v311 = vld [vmem:[%s1 + $0x908] sm:$0xff]
    %v312 = vld [vmem:[%s1 + $0x910] sm:$0xff]
    %v313 = vld [vmem:[%s1 + $0x918] sm:$0xff]
    %v314 = vld [vmem:[%s1 + $0x920] sm:$0xff]
    %v315 = vld [vmem:[%s1 + $0x928] sm:$0xff]
    %v316 = vld [vmem:[%s1 + $0x930] sm:$0xff]
    %v317 = vld [vmem:[%s1 + $0x938] sm:$0xff]
    %v318 = vld [vmem:[%s1 + $0x940] sm:$0xff]
    %v319 = vld [vmem:[%s1 + $0x948] sm:$0xff]
    %v320 = vld [vmem:[%s1 + $0x950] sm:$0xff]
    %v321 = vld [vmem:[%s1 + $0x958] sm:$0xff]
    %v322 = vld [vmem:[%s1 + $0x960] sm:$0xff]
    %v323 = vld [vmem:[%s1 + $0x968] sm:$0xff]
    %v324 = vld [vmem:[%s1 + $0x970] sm:$0xff]
    %v325 = vld [vmem:[%s1 + $0x978] sm:$0xff]
    %v326 = vld [vmem:[%s1 + $0x980] sm:$0xff]
    %v327 = vld [vmem:[%s1 + $0x988] sm:$0xff]
    %v328 = vld [vmem:[%s1 + $0x990] sm:$0xff]
    %v329 = vld [vmem:[%s1 + $0x998] sm:$0xff]
    %v330 = vld [vmem:[%s1 + $0x9a0] sm:$0xff]
    %v331 = vld [vmem:[%s1 + $0x9a8] sm:$0xff]
    %v332 = vld [vmem:[%s1 + $0x9b0] sm:$0xff]
    %v333 = vld [vmem:[%s1 + $0x9b8] sm:$0xff]
    %v334 = vld [vmem:[%s1 + $0x9c0] sm:$0xff]
    %v335 = vld [vmem:[%s1 + $0x9c8] sm:$0xff]
    %v336 = vld [vmem:[%s1 + $0x9d0] sm:$0xff]
    %v337 = vld [vmem:[%s1 + $0x9d8] sm:$0xff]
    %v338 = vld [vmem:[%s1 + $0x9e0] sm:$0xff]
    %v339 = vld [vmem:[%s1 + $0x9e8] sm:$0xff]
    %v340 = vld [vmem:[%s1 + $0x9f0] sm:$0xff]
    %v341 = vld [vmem:[%s1 + $0x9f8] sm:$0xff]
    %v342 = vld [vmem:[%s1 + $0xa00] sm:$0xff]
    %v343 = vld [vmem:[%s1 + $0xa08] sm:$0xff]
    %v344 = vld [vmem:[%s1 + $0xa10] sm:$0xff]
    %v345 = vld [vmem:[%s1 + $0xa18] sm:$0xff]
    %v346 = vld [vmem:[%s1 + $0xa20] sm:$0xff]
    %v347 = vld [vmem:[%s1 + $0xa28] sm:$0xff]
    %v348 = vld [vmem:[%s1 + $0xa30] sm:$0xff]
    %v349 = vld [vmem:[%s1 + $0xa38] sm:$0xff]
    %v350 = vld [vmem:[%s1 + $0xa40] sm:$0xff]
    %v351 = vld [vmem:[%s1 + $0xa48] sm:$0xff]
    %v352 = vld [vmem:[%s1 + $0xa50] sm:$0xff]
    %v353 = vld [vmem:[%s1 + $0xa58] sm:$0xff]
    %v354 = vld [vmem:[%s1 + $0xa60] sm:$0xff]
    %v355 = vld [vmem:[%s1 + $0xa68] sm:$0xff]
    %v356 = vld [vmem:[%s1 + $0xa70] sm:$0xff]
    %v357 = vld [vmem:[%s1 + $0xa78] sm:$0xff]
    %v358 = vld [vmem:[%s1 + $0xa80] sm:$0xff]
    %v359 = vld [vmem:[%s1 + $0xa88] sm:$0xff]
    %v360 = vld [vmem:[%s1 + $0xa90] sm:$0xff]
    %v361 = vld [vmem:[%s1 + $0xa98] sm:$0xff]
    %v362 = vld [vmem:[%s1 + $0xaa0] sm:$0xff]
    %v363 = vld [vmem:[%s1 + $0xaa8] sm:$0xff]
    %v364 = vld [vmem:[%s1 + $0xab0] sm:$0xff]
    %v365 = vld [vmem:[%s1 + $0xab8] sm:$0xff]
    %v366 = vld [vmem:[%s1 + $0xac0] sm:$0xff]
    %v367 = vld [vmem:[%s1 + $0xac8] sm:$0xff]
    %v368 = vld [vmem:[%s1 + $0xad0] sm:$0xff]
    %v369 = vld [vmem:[%s1 + $0xad8] sm:$0xff]
    %v370 = vld [vmem:[%s1 + $0xae0] sm:$0xff]
    %v371 = vld [vmem:[%s1 + $0xae8] sm:$0xff]
    %v372 = vld [vmem:[%s1 + $0xaf0] sm:$0xff]
    %v373 = vld [vmem:[%s1 + $0xaf8] sm:$0xff]
    %v374 = vld [vmem:[%s1 + $0xb00] sm:$0xff]
    %v375 = vld [vmem:[%s1 + $0xb08] sm:$0xff]
    %v376 = vld [vmem:[%s1 + $0xb10] sm:$0xff]
    %v377 = vld [vmem:[%s1 + $0xb18] sm:$0xff]
    %v378 = vld [vmem:[%s1 + $0xb20] sm:$0xff]
    %v379 = vld [vmem:[%s1 + $0xb28] sm:$0xff]
    %v380 = vld [vmem:[%s1 + $0xb30] sm:$0xff]
    %v381 = vld [vmem:[%s1 + $0xb38] sm:$0xff]
    %v382 = vld [vmem:[%s1 + $0xb40] sm:$0xff]
    %v383 = vld [vmem:[%s1 + $0xb48] sm:$0xff]
    %v384 = vld [vmem:[%s1 + $0xb50] sm:$0xff]
    %v385 = vld [vmem:[%s1 + $0xb58] sm:$0xff]
    %v386 = vld [vmem:[%s1 + $0xb60] sm:$0xff]
    %v387 = vld [vmem:[%s1 + $0xb68] sm:$0xff]
    %v388 = vld [vmem:[%s1 + $0xb70] sm:$0xff]
    %v389 = vld [vmem:[%s1 + $0xb78] sm:$0xff]
    %v390 = vld [vmem:[%s1 + $0xb80] sm:$0xff]
    %v391 = vld [vmem:[%s1 + $0xb88] sm:$0xff]
    %v392 = vld [vmem:[%s1 + $0xb90] sm:$0xff]
    %v393 = vld [vmem:[%s1 + $0xb98] sm:$0xff]
    %v394 = vld [vmem:[%s1 + $0xba0] sm:$0xff]
    %v395 = vld [vmem:[%s1 + $0xba8] sm:$0xff]
    %v396 = vld [vmem:[%s1 + $0xbb0] sm:$0xff]
    %v397 = vld [vmem:[%s1 + $0xbb8] sm:$0xff]
    %v398 = vld [vmem:[%s1 + $0xbc0] sm:$0xff]
    %v399 = vld [vmem:[%s1 + $0xbc8] sm:$0xff]
    %v400 = vld [vmem:[%s1 + $0xbd0] sm:$0xff]
    %v401 = vld [vmem:[%s1 + $0xbd8] sm:$0xff]
    %v402 = vld [vmem:[%s1 + $0xbe0] sm:$0xff]
    %v403 = vld [vmem:[%s1 + $0xbe8] sm:$0xff]
    %v404 = vld [vmem:[%s1 + $0xbf0] sm:$0xff]
    %v405 = vld [vmem:[%s1 + $0xbf8] sm:$0xff]
    %v406 = vld [vmem:[%s1 + $0xc00] sm:$0xff]
    %v407 = vld [vmem:[%s1 + $0xc08] sm:$0xff]
    %v408 = vld [vmem:[%s1 + $0xc10] sm:$0xff]
    %v409 = vld [vmem:[%s1 + $0xc18] sm:$0xff]
    %v410 = vld [vmem:[%s1 + $0xc20] sm:$0xff]
    %v411 = vld [vmem:[%s1 + $0xc28] sm:$0xff]
    %v412 = vld [vmem:[%s1 + $0xc30] sm:$0xff]
    %v413 = vld [vmem:[%s1 + $0xc38] sm:$0xff]
    %v414 = vld [vmem:[%s2] sm:$0x1]
    %v416 = vperm.slane %v414, 0
    %425 = vst [vmem:[#allocation1] ss:$4 sm:$0xff] %v15
    %s426 = scalar_lea.vmem [#allocation1], 32
    %427 = vst [vmem:[%s426] ss:$4 sm:$0xff] %v16
    %v428 = vld.sshfl [vmem:[#allocation1] sm:$0xff pattern:$0x73625140]
    %v429 = vld.sshfl [vmem:[#allocation1 + $0x8] sm:$0xff pattern:$0x73625140]
    %v430 = vld.sshfl [vmem:[#allocation1 + $0x10] sm:$0xff pattern:$0x73625140]
    %v431 = vld.sshfl [vmem:[#allocation1 + $0x18] sm:$0xff pattern:$0x73625140]
    %v432 = vld.sshfl [vmem:[#allocation1 + $0x20] sm:$0xff pattern:$0x73625140]
    %v433 = vld.sshfl [vmem:[#allocation1 + $0x28] sm:$0xff pattern:$0x73625140]
    %v434 = vld.sshfl [vmem:[#allocation1 + $0x30] sm:$0xff pattern:$0x73625140]
    %v435 = vld.sshfl [vmem:[#allocation1 + $0x38] sm:$0xff pattern:$0x73625140]
    %436 = vst [vmem:[#allocation1] ss:$4 sm:$0xff] %v17
    %437 = vst [vmem:[%s426] ss:$4 sm:$0xff] %v18
    %v438 = vld.sshfl [vmem:[#allocation1] sm:$0xff pattern:$0x73625140]
    %v439 = vld.sshfl [vmem:[#allocation1 + $0x8] sm:$0xff pattern:$0x73625140]
    %v440 = vld.sshfl [vmem:[#allocation1 + $0x10] sm:$0xff pattern:$0x73625140]
    %v441 = vld.sshfl [vmem:[#allocation1 + $0x18] sm:$0xff pattern:$0x73625140]
    %v442 = vld.sshfl [vmem:[#allocation1 + $0x20] sm:$0xff pattern:$0x73625140]
    %v443 = vld.sshfl [vmem:[#allocation1 + $0x28] sm:$0xff pattern:$0x73625140]
    %v444 = vld.sshfl [vmem:[#allocation1 + $0x30] sm:$0xff pattern:$0x73625140]
    %v445 = vld.sshfl [vmem:[#allocation1 + $0x38] sm:$0xff pattern:$0x73625140]
    %446 = vst [vmem:[#allocation1] ss:$4 sm:$0xff] %v19
    %447 = vst [vmem:[%s426] ss:$4 sm:$0xff] %v20
    %v448 = vld.sshfl [vmem:[#allocation1] sm:$0xff pattern:$0x73625140]
    %v449 = vld.sshfl [vmem:[#allocation1 + $0x8] sm:$0xff pattern:$0x73625140]
    %v450 = vld.sshfl [vmem:[#allocation1 + $0x10] sm:$0xff pattern:$0x73625140]
    %v451 = vld.sshfl [vmem:[#allocation1 + $0x18] sm:$0xff pattern:$0x73625140]
    %v452 = vld.sshfl [vmem:[#allocation1 + $0x20] sm:$0xff pattern:$0x73625140]
    %v453 = vld.sshfl [vmem:[#allocation1 + $0x28] sm:$0xff pattern:$0x73625140]
    %v454 = vld.sshfl [vmem:[#allocation1 + $0x30] sm:$0xff pattern:$0x73625140]
    %v455 = vld.sshfl [vmem:[#allocation1 + $0x38] sm:$0xff pattern:$0x73625140]
    %456 = vst [vmem:[#allocation1] ss:$4 sm:$0xff] %v21
    %v457 = vld.sshfl [vmem:[#allocation1] sm:$0xff pattern:$0x73625140]
    %vm482 = vcmask 523264
    %v483 = vsel %vm482, %v457, 0
    %485 = vmatpush.msra.mxu0 %v37
    %486 = vmatpush.msra.mxu0 %v36
    %487 = vmatpush.msra.mxu0 %v35
    %488 = vmatpush.msra.mxu0 %v34
    %489 = vmatpush.msra.mxu0 %v33
    %490 = vmatpush.msra.mxu0 %v32
    %491 = vmatpush.msra.mxu0 %v31
    %492 = vmatpush.msra.mxu0 %v30
    %493 = vmatpush.msra.mxu0 %v29
    %494 = vmatpush.msra.mxu0 %v28
    %495 = vmatpush.msra.mxu0 %v27
    %496 = vmatpush.msra.mxu0 %v26
    %497 = vmatpush.msra.mxu0 %v25
    %498 = vmatpush.msra.mxu0 %v24
    %499 = vmatpush.msra.mxu0 %v23
    %500 = vmatpush.msra.mxu0 %v22
    %501 = vmatmul.f32.gmra.mxu0 %v428
    %v502 = vpop.f32.mrf.mxu0
    %v503 = vadd.f32 %v416, %v502
    %504 = vdwg.mxu0
    %505 = vmatpush.msra.mxu0 %v53
    %506 = vmatpush.msra.mxu0 %v52
    %507 = vmatpush.msra.mxu0 %v51
    %508 = vmatpush.msra.mxu0 %v50
    %509 = vmatpush.msra.mxu0 %v49
    %510 = vmatpush.msra.mxu0 %v48
    %511 = vmatpush.msra.mxu0 %v47
    %512 = vmatpush.msra.mxu0 %v46
    %513 = vmatpush.msra.mxu0 %v45
    %514 = vmatpush.msra.mxu0 %v44
    %515 = vmatpush.msra.mxu0 %v43
    %516 = vmatpush.msra.mxu0 %v42
    %517 = vmatpush.msra.mxu0 %v41
    %518 = vmatpush.msra.mxu0 %v40
    %519 = vmatpush.msra.mxu0 %v39
    %520 = vmatpush.msra.mxu0 %v38
    %521 = vmatmul.f32.gmra.mxu0 %v429
    %v522 = vpop.f32.mrf.mxu0
    %v523 = vadd.f32 %v503, %v522
    %524 = vdwg.mxu0
    %525 = vmatpush.msra.mxu0 %v69
    %526 = vmatpush.msra.mxu0 %v68
    %527 = vmatpush.msra.mxu0 %v67
    %528 = vmatpush.msra.mxu0 %v66
    %529 = vmatpush.msra.mxu0 %v65
    %530 = vmatpush.msra.mxu0 %v64
    %531 = vmatpush.msra.mxu0 %v63
    %532 = vmatpush.msra.mxu0 %v62
    %533 = vmatpush.msra.mxu0 %v61
    %534 = vmatpush.msra.mxu0 %v60
    %535 = vmatpush.msra.mxu0 %v59
    %536 = vmatpush.msra.mxu0 %v58
    %537 = vmatpush.msra.mxu0 %v57
    %538 = vmatpush.msra.mxu0 %v56
    %539 = vmatpush.msra.mxu0 %v55
    %540 = vmatpush.msra.mxu0 %v54
    %541 = vmatmul.f32.gmra.mxu0 %v430
    %v542 = vpop.f32.mrf.mxu0
    %v543 = vadd.f32 %v523, %v542
    %544 = vdwg.mxu0
    %545 = vmatpush.msra.mxu0 %v85
    %546 = vmatpush.msra.mxu0 %v84
    %547 = vmatpush.msra.mxu0 %v83
    %548 = vmatpush.msra.mxu0 %v82
    %549 = vmatpush.msra.mxu0 %v81
    %550 = vmatpush.msra.mxu0 %v80
    %551 = vmatpush.msra.mxu0 %v79
    %552 = vmatpush.msra.mxu0 %v78
    %553 = vmatpush.msra.mxu0 %v77
    %554 = vmatpush.msra.mxu0 %v76
    %555 = vmatpush.msra.mxu0 %v75
    %556 = vmatpush.msra.mxu0 %v74
    %557 = vmatpush.msra.mxu0 %v73
    %558 = vmatpush.msra.mxu0 %v72
    %559 = vmatpush.msra.mxu0 %v71
    %560 = vmatpush.msra.mxu0 %v70
    %561 = vmatmul.f32.gmra.mxu0 %v431
    %v562 = vpop.f32.mrf.mxu0
    %v563 = vadd.f32 %v543, %v562
    %564 = vdwg.mxu0
    %565 = vmatpush.msra.mxu0 %v101
    %566 = vmatpush.msra.mxu0 %v100
    %567 = vmatpush.msra.mxu0 %v99
    %568 = vmatpush.msra.mxu0 %v98
    %569 = vmatpush.msra.mxu0 %v97
    %570 = vmatpush.msra.mxu0 %v96
    %571 = vmatpush.msra.mxu0 %v95
    %572 = vmatpush.msra.mxu0 %v94
    %573 = vmatpush.msra.mxu0 %v93
    %574 = vmatpush.msra.mxu0 %v92
    %575 = vmatpush.msra.mxu0 %v91
    %576 = vmatpush.msra.mxu0 %v90
    %577 = vmatpush.msra.mxu0 %v89
    %578 = vmatpush.msra.mxu0 %v88
    %579 = vmatpush.msra.mxu0 %v87
    %580 = vmatpush.msra.mxu0 %v86
    %581 = vmatmul.f32.gmra.mxu0 %v432
    %v582 = vpop.f32.mrf.mxu0
    %v583 = vadd.f32 %v563, %v582
    %584 = vdwg.mxu0
    %585 = vmatpush.msra.mxu0 %v117
    %586 = vmatpush.msra.mxu0 %v116
    %587 = vmatpush.msra.mxu0 %v115
    %588 = vmatpush.msra.mxu0 %v114
    %589 = vmatpush.msra.mxu0 %v113
    %590 = vmatpush.msra.mxu0 %v112
    %591 = vmatpush.msra.mxu0 %v111
    %592 = vmatpush.msra.mxu0 %v110
    %593 = vmatpush.msra.mxu0 %v109
    %594 = vmatpush.msra.mxu0 %v108
    %595 = vmatpush.msra.mxu0 %v107
    %596 = vmatpush.msra.mxu0 %v106
    %597 = vmatpush.msra.mxu0 %v105
    %598 = vmatpush.msra.mxu0 %v104
    %599 = vmatpush.msra.mxu0 %v103
    %600 = vmatpush.msra.mxu0 %v102
    %601 = vmatmul.f32.gmra.mxu0 %v433
    %v602 = vpop.f32.mrf.mxu0
    %v603 = vadd.f32 %v583, %v602
    %604 = vdwg.mxu0
    %605 = vmatpush.msra.mxu0 %v133
    %606 = vmatpush.msra.mxu0 %v132
    %607 = vmatpush.msra.mxu0 %v131
    %608 = vmatpush.msra.mxu0 %v130
    %609 = vmatpush.msra.mxu0 %v129
    %610 = vmatpush.msra.mxu0 %v128
    %611 = vmatpush.msra.mxu0 %v127
    %612 = vmatpush.msra.mxu0 %v126
    %613 = vmatpush.msra.mxu0 %v125
    %614 = vmatpush.msra.mxu0 %v124
    %615 = vmatpush.msra.mxu0 %v123
    %616 = vmatpush.msra.mxu0 %v122
    %617 = vmatpush.msra.mxu0 %v121
    %618 = vmatpush.msra.mxu0 %v120
    %619 = vmatpush.msra.mxu0 %v119
    %620 = vmatpush.msra.mxu0 %v118
    %621 = vmatmul.f32.gmra.mxu0 %v434
    %v622 = vpop.f32.mrf.mxu0
    %v623 = vadd.f32 %v603, %v622
    %624 = vdwg.mxu0
    %625 = vmatpush.msra.mxu0 %v149
    %626 = vmatpush.msra.mxu0 %v148
    %627 = vmatpush.msra.mxu0 %v147
    %628 = vmatpush.msra.mxu0 %v146
    %629 = vmatpush.msra.mxu0 %v145
    %630 = vmatpush.msra.mxu0 %v144
    %631 = vmatpush.msra.mxu0 %v143
    %632 = vmatpush.msra.mxu0 %v142
    %633 = vmatpush.msra.mxu0 %v141
    %634 = vmatpush.msra.mxu0 %v140
    %635 = vmatpush.msra.mxu0 %v139
    %636 = vmatpush.msra.mxu0 %v138
    %637 = vmatpush.msra.mxu0 %v137
    %638 = vmatpush.msra.mxu0 %v136
    %639 = vmatpush.msra.mxu0 %v135
    %640 = vmatpush.msra.mxu0 %v134
    %641 = vmatmul.f32.gmra.mxu0 %v435
    %v642 = vpop.f32.mrf.mxu0
    %v643 = vadd.f32 %v623, %v642
    %644 = vdwg.mxu0
    %645 = vmatpush.msra.mxu0 %v165
    %646 = vmatpush.msra.mxu0 %v164
    %647 = vmatpush.msra.mxu0 %v163
    %648 = vmatpush.msra.mxu0 %v162
    %649 = vmatpush.msra.mxu0 %v161
    %650 = vmatpush.msra.mxu0 %v160
    %651 = vmatpush.msra.mxu0 %v159
    %652 = vmatpush.msra.mxu0 %v158
    %653 = vmatpush.msra.mxu0 %v157
    %654 = vmatpush.msra.mxu0 %v156
    %655 = vmatpush.msra.mxu0 %v155
    %656 = vmatpush.msra.mxu0 %v154
    %657 = vmatpush.msra.mxu0 %v153
    %658 = vmatpush.msra.mxu0 %v152
    %659 = vmatpush.msra.mxu0 %v151
    %660 = vmatpush.msra.mxu0 %v150
    %661 = vmatmul.f32.gmra.mxu0 %v438
    %v662 = vpop.f32.mrf.mxu0
    %v663 = vadd.f32 %v643, %v662
    %664 = vdwg.mxu0
    %665 = vmatpush.msra.mxu0 %v181
    %666 = vmatpush.msra.mxu0 %v180
    %667 = vmatpush.msra.mxu0 %v179
    %668 = vmatpush.msra.mxu0 %v178
    %669 = vmatpush.msra.mxu0 %v177
    %670 = vmatpush.msra.mxu0 %v176
    %671 = vmatpush.msra.mxu0 %v175
    %672 = vmatpush.msra.mxu0 %v174
    %673 = vmatpush.msra.mxu0 %v173
    %674 = vmatpush.msra.mxu0 %v172
    %675 = vmatpush.msra.mxu0 %v171
    %676 = vmatpush.msra.mxu0 %v170
    %677 = vmatpush.msra.mxu0 %v169
    %678 = vmatpush.msra.mxu0 %v168
    %679 = vmatpush.msra.mxu0 %v167
    %680 = vmatpush.msra.mxu0 %v166
    %681 = vmatmul.f32.gmra.mxu0 %v439
    %v682 = vpop.f32.mrf.mxu0
    %v683 = vadd.f32 %v663, %v682
    %684 = vdwg.mxu0
    %685 = vmatpush.msra.mxu0 %v197
    %686 = vmatpush.msra.mxu0 %v196
    %687 = vmatpush.msra.mxu0 %v195
    %688 = vmatpush.msra.mxu0 %v194
    %689 = vmatpush.msra.mxu0 %v193
    %690 = vmatpush.msra.mxu0 %v192
    %691 = vmatpush.msra.mxu0 %v191
    %692 = vmatpush.msra.mxu0 %v190
    %693 = vmatpush.msra.mxu0 %v189
    %694 = vmatpush.msra.mxu0 %v188
    %695 = vmatpush.msra.mxu0 %v187
    %696 = vmatpush.msra.mxu0 %v186
    %697 = vmatpush.msra.mxu0 %v185
    %698 = vmatpush.msra.mxu0 %v184
    %699 = vmatpush.msra.mxu0 %v183
    %700 = vmatpush.msra.mxu0 %v182
    %701 = vmatmul.f32.gmra.mxu0 %v440
    %v702 = vpop.f32.mrf.mxu0
    %v703 = vadd.f32 %v683, %v702
    %704 = vdwg.mxu0
    %705 = vmatpush.msra.mxu0 %v213
    %706 = vmatpush.msra.mxu0 %v212
    %707 = vmatpush.msra.mxu0 %v211
    %708 = vmatpush.msra.mxu0 %v210
    %709 = vmatpush.msra.mxu0 %v209
    %710 = vmatpush.msra.mxu0 %v208
    %711 = vmatpush.msra.mxu0 %v207
    %712 = vmatpush.msra.mxu0 %v206
    %713 = vmatpush.msra.mxu0 %v205
    %714 = vmatpush.msra.mxu0 %v204
    %715 = vmatpush.msra.mxu0 %v203
    %716 = vmatpush.msra.mxu0 %v202
    %717 = vmatpush.msra.mxu0 %v201
    %718 = vmatpush.msra.mxu0 %v200
    %719 = vmatpush.msra.mxu0 %v199
    %720 = vmatpush.msra.mxu0 %v198
    %721 = vmatmul.f32.gmra.mxu0 %v441
    %v722 = vpop.f32.mrf.mxu0
    %v723 = vadd.f32 %v703, %v722
    %724 = vdwg.mxu0
    %725 = vmatpush.msra.mxu0 %v229
    %726 = vmatpush.msra.mxu0 %v228
    %727 = vmatpush.msra.mxu0 %v227
    %728 = vmatpush.msra.mxu0 %v226
    %729 = vmatpush.msra.mxu0 %v225
    %730 = vmatpush.msra.mxu0 %v224
    %731 = vmatpush.msra.mxu0 %v223
    %732 = vmatpush.msra.mxu0 %v222
    %733 = vmatpush.msra.mxu0 %v221
    %734 = vmatpush.msra.mxu0 %v220
    %735 = vmatpush.msra.mxu0 %v219
    %736 = vmatpush.msra.mxu0 %v218
    %737 = vmatpush.msra.mxu0 %v217
    %738 = vmatpush.msra.mxu0 %v216
    %739 = vmatpush.msra.mxu0 %v215
    %740 = vmatpush.msra.mxu0 %v214
    %741 = vmatmul.f32.gmra.mxu0 %v442
    %v742 = vpop.f32.mrf.mxu0
    %v743 = vadd.f32 %v723, %v742
    %744 = vdwg.mxu0
    %745 = vmatpush.msra.mxu0 %v245
    %746 = vmatpush.msra.mxu0 %v244
    %747 = vmatpush.msra.mxu0 %v243
    %748 = vmatpush.msra.mxu0 %v242
    %749 = vmatpush.msra.mxu0 %v241
    %750 = vmatpush.msra.mxu0 %v240
    %751 = vmatpush.msra.mxu0 %v239
    %752 = vmatpush.msra.mxu0 %v238
    %753 = vmatpush.msra.mxu0 %v237
    %754 = vmatpush.msra.mxu0 %v236
    %755 = vmatpush.msra.mxu0 %v235
    %756 = vmatpush.msra.mxu0 %v234
    %757 = vmatpush.msra.mxu0 %v233
    %758 = vmatpush.msra.mxu0 %v232
    %759 = vmatpush.msra.mxu0 %v231
    %760 = vmatpush.msra.mxu0 %v230
    %761 = vmatmul.f32.gmra.mxu0 %v443
    %v762 = vpop.f32.mrf.mxu0
    %v763 = vadd.f32 %v743, %v762
    %764 = vdwg.mxu0
    %765 = vmatpush.msra.mxu0 %v261
    %766 = vmatpush.msra.mxu0 %v260
    %767 = vmatpush.msra.mxu0 %v259
    %768 = vmatpush.msra.mxu0 %v258
    %769 = vmatpush.msra.mxu0 %v257
    %770 = vmatpush.msra.mxu0 %v256
    %771 = vmatpush.msra.mxu0 %v255
    %772 = vmatpush.msra.mxu0 %v254
    %773 = vmatpush.msra.mxu0 %v253
    %774 = vmatpush.msra.mxu0 %v252
    %775 = vmatpush.msra.mxu0 %v251
    %776 = vmatpush.msra.mxu0 %v250
    %777 = vmatpush.msra.mxu0 %v249
    %778 = vmatpush.msra.mxu0 %v248
    %779 = vmatpush.msra.mxu0 %v247
    %780 = vmatpush.msra.mxu0 %v246
    %781 = vmatmul.f32.gmra.mxu0 %v444
    %v782 = vpop.f32.mrf.mxu0
    %v783 = vadd.f32 %v763, %v782
    %784 = vdwg.mxu0
    %785 = vmatpush.msra.mxu0 %v277
    %786 = vmatpush.msra.mxu0 %v276
    %787 = vmatpush.msra.mxu0 %v275
    %788 = vmatpush.msra.mxu0 %v274
    %789 = vmatpush.msra.mxu0 %v273
    %790 = vmatpush.msra.mxu0 %v272
    %791 = vmatpush.msra.mxu0 %v271
    %792 = vmatpush.msra.mxu0 %v270
    %793 = vmatpush.msra.mxu0 %v269
    %794 = vmatpush.msra.mxu0 %v268
    %795 = vmatpush.msra.mxu0 %v267
    %796 = vmatpush.msra.mxu0 %v266
    %797 = vmatpush.msra.mxu0 %v265
    %798 = vmatpush.msra.mxu0 %v264
    %799 = vmatpush.msra.mxu0 %v263
    %800 = vmatpush.msra.mxu0 %v262
    %801 = vmatmul.f32.gmra.mxu0 %v445
    %v802 = vpop.f32.mrf.mxu0
    %v803 = vadd.f32 %v783, %v802
    %804 = vdwg.mxu0
    %805 = vmatpush.msra.mxu0 %v293
    %806 = vmatpush.msra.mxu0 %v292
    %807 = vmatpush.msra.mxu0 %v291
    %808 = vmatpush.msra.mxu0 %v290
    %809 = vmatpush.msra.mxu0 %v289
    %810 = vmatpush.msra.mxu0 %v288
    %811 = vmatpush.msra.mxu0 %v287
    %812 = vmatpush.msra.mxu0 %v286
    %813 = vmatpush.msra.mxu0 %v285
    %814 = vmatpush.msra.mxu0 %v284
    %815 = vmatpush.msra.mxu0 %v283
    %816 = vmatpush.msra.mxu0 %v282
    %817 = vmatpush.msra.mxu0 %v281
    %818 = vmatpush.msra.mxu0 %v280
    %819 = vmatpush.msra.mxu0 %v279
    %820 = vmatpush.msra.mxu0 %v278
    %821 = vmatmul.f32.gmra.mxu0 %v448
    %v822 = vpop.f32.mrf.mxu0
    %v823 = vadd.f32 %v803, %v822
    %824 = vdwg.mxu0
    %825 = vmatpush.msra.mxu0 %v309
    %826 = vmatpush.msra.mxu0 %v308
    %827 = vmatpush.msra.mxu0 %v307
    %828 = vmatpush.msra.mxu0 %v306
    %829 = vmatpush.msra.mxu0 %v305
    %830 = vmatpush.msra.mxu0 %v304
    %831 = vmatpush.msra.mxu0 %v303
    %832 = vmatpush.msra.mxu0 %v302
    %833 = vmatpush.msra.mxu0 %v301
    %834 = vmatpush.msra.mxu0 %v300
    %835 = vmatpush.msra.mxu0 %v299
    %836 = vmatpush.msra.mxu0 %v298
    %837 = vmatpush.msra.mxu0 %v297
    %838 = vmatpush.msra.mxu0 %v296
    %839 = vmatpush.msra.mxu0 %v295
    %840 = vmatpush.msra.mxu0 %v294
    %841 = vmatmul.f32.gmra.mxu0 %v449
    %v842 = vpop.f32.mrf.mxu0
    %v843 = vadd.f32 %v823, %v842
    %844 = vdwg.mxu0
    %845 = vmatpush.msra.mxu0 %v325
    %846 = vmatpush.msra.mxu0 %v324
    %847 = vmatpush.msra.mxu0 %v323
    %848 = vmatpush.msra.mxu0 %v322
    %849 = vmatpush.msra.mxu0 %v321
    %850 = vmatpush.msra.mxu0 %v320
    %851 = vmatpush.msra.mxu0 %v319
    %852 = vmatpush.msra.mxu0 %v318
    %853 = vmatpush.msra.mxu0 %v317
    %854 = vmatpush.msra.mxu0 %v316
    %855 = vmatpush.msra.mxu0 %v315
    %856 = vmatpush.msra.mxu0 %v314
    %857 = vmatpush.msra.mxu0 %v313
    %858 = vmatpush.msra.mxu0 %v312
    %859 = vmatpush.msra.mxu0 %v311
    %860 = vmatpush.msra.mxu0 %v310
    %861 = vmatmul.f32.gmra.mxu0 %v450
    %v862 = vpop.f32.mrf.mxu0
    %v863 = vadd.f32 %v843, %v862
    %864 = vdwg.mxu0
    %865 = vmatpush.msra.mxu0 %v341
    %866 = vmatpush.msra.mxu0 %v340
    %867 = vmatpush.msra.mxu0 %v339
    %868 = vmatpush.msra.mxu0 %v338
    %869 = vmatpush.msra.mxu0 %v337
    %870 = vmatpush.msra.mxu0 %v336
    %871 = vmatpush.msra.mxu0 %v335
    %872 = vmatpush.msra.mxu0 %v334
    %873 = vmatpush.msra.mxu0 %v333
    %874 = vmatpush.msra.mxu0 %v332
    %875 = vmatpush.msra.mxu0 %v331
    %876 = vmatpush.msra.mxu0 %v330
    %877 = vmatpush.msra.mxu0 %v329
    %878 = vmatpush.msra.mxu0 %v328
    %879 = vmatpush.msra.mxu0 %v327
    %880 = vmatpush.msra.mxu0 %v326
    %881 = vmatmul.f32.gmra.mxu0 %v451
    %v882 = vpop.f32.mrf.mxu0
    %v883 = vadd.f32 %v863, %v882
    %884 = vdwg.mxu0
    %885 = vmatpush.msra.mxu0 %v357
    %886 = vmatpush.msra.mxu0 %v356
    %887 = vmatpush.msra.mxu0 %v355
    %888 = vmatpush.msra.mxu0 %v354
    %889 = vmatpush.msra.mxu0 %v353
    %890 = vmatpush.msra.mxu0 %v352
    %891 = vmatpush.msra.mxu0 %v351
    %892 = vmatpush.msra.mxu0 %v350
    %893 = vmatpush.msra.mxu0 %v349
    %894 = vmatpush.msra.mxu0 %v348
    %895 = vmatpush.msra.mxu0 %v347
    %896 = vmatpush.msra.mxu0 %v346
    %897 = vmatpush.msra.mxu0 %v345
    %898 = vmatpush.msra.mxu0 %v344
    %899 = vmatpush.msra.mxu0 %v343
    %900 = vmatpush.msra.mxu0 %v342
    %901 = vmatmul.f32.gmra.mxu0 %v452
    %v902 = vpop.f32.mrf.mxu0
    %v903 = vadd.f32 %v883, %v902
    %904 = vdwg.mxu0
    %905 = vmatpush.msra.mxu0 %v373
    %906 = vmatpush.msra.mxu0 %v372
    %907 = vmatpush.msra.mxu0 %v371
    %908 = vmatpush.msra.mxu0 %v370
    %909 = vmatpush.msra.mxu0 %v369
    %910 = vmatpush.msra.mxu0 %v368
    %911 = vmatpush.msra.mxu0 %v367
    %912 = vmatpush.msra.mxu0 %v366
    %913 = vmatpush.msra.mxu0 %v365
    %914 = vmatpush.msra.mxu0 %v364
    %915 = vmatpush.msra.mxu0 %v363
    %916 = vmatpush.msra.mxu0 %v362
    %917 = vmatpush.msra.mxu0 %v361
    %918 = vmatpush.msra.mxu0 %v360
    %919 = vmatpush.msra.mxu0 %v359
    %920 = vmatpush.msra.mxu0 %v358
    %921 = vmatmul.f32.gmra.mxu0 %v453
    %v922 = vpop.f32.mrf.mxu0
    %v923 = vadd.f32 %v903, %v922
    %924 = vdwg.mxu0
    %925 = vmatpush.msra.mxu0 %v389
    %926 = vmatpush.msra.mxu0 %v388
    %927 = vmatpush.msra.mxu0 %v387
    %928 = vmatpush.msra.mxu0 %v386
    %929 = vmatpush.msra.mxu0 %v385
    %930 = vmatpush.msra.mxu0 %v384
    %931 = vmatpush.msra.mxu0 %v383
    %932 = vmatpush.msra.mxu0 %v382
    %933 = vmatpush.msra.mxu0 %v381
    %934 = vmatpush.msra.mxu0 %v380
    %935 = vmatpush.msra.mxu0 %v379
    %936 = vmatpush.msra.mxu0 %v378
    %937 = vmatpush.msra.mxu0 %v377
    %938 = vmatpush.msra.mxu0 %v376
    %939 = vmatpush.msra.mxu0 %v375
    %940 = vmatpush.msra.mxu0 %v374
    %941 = vmatmul.f32.gmra.mxu0 %v454
    %v942 = vpop.f32.mrf.mxu0
    %v943 = vadd.f32 %v923, %v942
    %944 = vdwg.mxu0
    %945 = vmatpush.msra.mxu0 %v405
    %946 = vmatpush.msra.mxu0 %v404
    %947 = vmatpush.msra.mxu0 %v403
    %948 = vmatpush.msra.mxu0 %v402
    %949 = vmatpush.msra.mxu0 %v401
    %950 = vmatpush.msra.mxu0 %v400
    %951 = vmatpush.msra.mxu0 %v399
    %952 = vmatpush.msra.mxu0 %v398
    %953 = vmatpush.msra.mxu0 %v397
    %954 = vmatpush.msra.mxu0 %v396
    %955 = vmatpush.msra.mxu0 %v395
    %956 = vmatpush.msra.mxu0 %v394
    %957 = vmatpush.msra.mxu0 %v393
    %958 = vmatpush.msra.mxu0 %v392
    %959 = vmatpush.msra.mxu0 %v391
    %960 = vmatpush.msra.mxu0 %v390
    %961 = vmatmul.f32.gmra.mxu0 %v455
    %v962 = vpop.f32.mrf.mxu0
    %v963 = vadd.f32 %v943, %v962
    %964 = vdwg.mxu0
    %965 = vmatpush.msra.mxu0 0.0
    %966 = vmatpush.msra.mxu0 0.0
    %967 = vmatpush.msra.mxu0 0.0
    %968 = vmatpush.msra.mxu0 0.0
    %969 = vmatpush.msra.mxu0 0.0
    %970 = vmatpush.msra.mxu0 0.0
    %971 = vmatpush.msra.mxu0 0.0
    %972 = vmatpush.msra.mxu0 0.0
    %973 = vmatpush.msra.mxu0 %v413
    %974 = vmatpush.msra.mxu0 %v412
    %975 = vmatpush.msra.mxu0 %v411
    %976 = vmatpush.msra.mxu0 %v410
    %977 = vmatpush.msra.mxu0 %v409
    %978 = vmatpush.msra.mxu0 %v408
    %979 = vmatpush.msra.mxu0 %v407
    %980 = vmatpush.msra.mxu0 %v406
    %981 = vmatmul.f32.gmra.mxu0 %v483
    %v982 = vpop.f32.mrf.mxu0
    %v983 = vadd.f32 %v963, %v982
    %984 = vdwg.mxu0
    %985 = vst [vmem:[#allocation2] sm:$0x3] %v983
    // Predicated region
    $region14: #{digit_classifier_forward.5} parent=1 // pred_check
      _
    $region15: #{digit_classifier_forward.5} parent=1 // pred_check_branch
      %987 = sbr.rel (0) target = $region17
    $region16: #{digit_classifier_forward.5} parent=1 // pred_region
      %989 = vsyncadd [#allocation3], 0
      %s991 = sshll.u32 [#allocation2], 4
      %s992 = int_to_ptr.vmem [resolvable:$true] %s991
      %s993 = sshll.u32 %s3, 4
      %s994 = int_to_ptr.hbm [resolvable:$true] %s993
      %996 = dma.vmem_to_hbm [thread:$0]  %s992, 32, %s994, [#allocation3]
    $region17: #{digit_classifier_forward.5} parent=1 // pred_fallthru
      _
    // Predicated region
    $region18: #{digit_classifier_forward.5} parent=1 // pred_check
      _
    $region19: #{digit_classifier_forward.5} parent=1 // pred_check_branch
      %998 = sbr.rel (0) target = $region21
    $region20: #{digit_classifier_forward.5} parent=1 // pred_region
      %1000 = dma.done [#allocation3], 32
    $region21: #{digit_classifier_forward.5} parent=1 // pred_fallthru
      _
    %1001 = vsyncpa [#allocation3], 1

</llo_original>
